<compile_context>
chip_gen: v7x
topology: tpu7x:2x2x1
jax: 0.10.0
libtpu: 0.0.40
codegen_flags: <defaults>
</compile_context>

<pallas_src>
import functools

import jax
import jax.numpy as jnp
from jax.experimental import pallas as pl
from jax.experimental.pallas import tpu as pltpu


def _mlp_softmax_kernel(x_ref, w1_ref, b1_ref, w2_ref, b2_ref,
                        w3_ref, b3_ref, w4_ref, b4_ref, o_ref):
    """One (tm, d_model) row-tile of the IntentClassifier MLP.

    x_ref : (TM, d_model) bf16 activations (already embedded)
    wK    : bf16 weights (full blocks, resident in VMEM across the grid)
    bK    : f32 biases, shaped (1, H) so they broadcast over the row tile
    o_ref : (TM, n_pad) bf16 softmax probabilities (class axis lane-padded to 128)
    """
    x = x_ref[...]                                                       # bf16

    h = jnp.dot(x, w1_ref[...], preferred_element_type=jnp.float32) + b1_ref[...]
    h = jnp.maximum(h, 0.0).astype(jnp.bfloat16)                         # ReLU (drop1 == identity)

    h = jnp.dot(h, w2_ref[...], preferred_element_type=jnp.float32) + b2_ref[...]
    h = jnp.maximum(h, 0.0).astype(jnp.bfloat16)                         # ReLU (drop2 == identity)

    h = jnp.dot(h, w3_ref[...], preferred_element_type=jnp.float32) + b3_ref[...]
    h = jnp.maximum(h, 0.0).astype(jnp.bfloat16)                         # ReLU (drop3 == identity)

    logits = jnp.dot(h, w4_ref[...], preferred_element_type=jnp.float32) + b4_ref[...]

    # numerically stable softmax over the (lane-padded) class axis; padded classes carry
    # a -1e30 bias -> exp() == 0, so they change neither the max nor the denominator.
    m = jnp.max(logits, axis=-1, keepdims=True)
    e = jnp.exp(logits - m)
    p = e * pl.reciprocal(jnp.sum(e, axis=-1, keepdims=True), approx=True)
    o_ref[...] = p.astype(o_ref.dtype)                                   # bf16, lane-dense store


def _auto_tm(seq, tm_max=512):
    """Pick the row tile: big enough to fill the 2x256^2 MXU (v6e/v7x), capped so a
    large seq still yields >=2 grid steps for the 'parallel' axis (v7x dual-TC)."""
    half = pl.cdiv((seq + 1) // 2, 128) * 128     # ceil(seq/2) rounded up to 128
    return int(max(128, min(tm_max, half)))


def prepare_params(raw_params):
    """One-time, out-of-the-call-path parameter preparation:
    bf16 casts, class-axis lane padding of the last layer, bias reshapes."""
    emb, (w1, b1), (w2, b2), (w3, b3), (w4, b4) = raw_params
    n_out = int(w4.shape[1])
    n_pad = max(128, pl.cdiv(n_out, 128) * 128)

    if n_pad != n_out:
        w4p = jnp.concatenate(
            [w4, jnp.zeros((w4.shape[0], n_pad - n_out), dtype=w4.dtype)], axis=1)
        b4p = jnp.concatenate(
            [b4.astype(jnp.float32),
             jnp.full((n_pad - n_out,), -1e30, dtype=jnp.float32)])
    else:
        w4p = w4
        b4p = b4.astype(jnp.float32)

    return {
        "emb": emb.astype(jnp.bfloat16),
        "w1": w1.astype(jnp.bfloat16), "b1": b1.reshape(1, -1).astype(jnp.float32),
        "w2": w2.astype(jnp.bfloat16), "b2": b2.reshape(1, -1).astype(jnp.float32),
        "w3": w3.astype(jnp.bfloat16), "b3": b3.reshape(1, -1).astype(jnp.float32),
        "w4": w4p.astype(jnp.bfloat16), "b4": b4p.reshape(1, -1),
        "n_out": n_out,
    }


def intent_classifier_forward(inputs, params, *, tm=None, out_dtype=jnp.float32):
    """inputs: (seq,) int32 token ids.  params: output of prepare_params.
    Returns (seq, n_output) probabilities in `out_dtype` (default float32)."""
    emb = params["emb"]
    w1, b1 = params["w1"], params["b1"]
    w2, b2 = params["w2"], params["b2"]
    w3, b3 = params["w3"], params["b3"]
    w4, b4 = params["w4"], params["b4"]
    n_out = params["n_out"]

    # --- glue: embedding gather on the pre-cast bf16 table (only gathered rows move) ---
    # TODO(synk): fuse this gather into the kernel via scalar-prefetched ids + manual DMA
    # for serving-scale sequence lengths (removes an extra HBM round trip of activations).
    x = jnp.take(emb, inputs, axis=0)                                    # (seq, d_model) bf16

    seq, d_model = x.shape
    h1, h2, h3 = w1.shape[1], w2.shape[1], w3.shape[1]
    n_pad = w4.shape[1]

    if tm is None:
        tm = _auto_tm(seq)

    # No jnp.pad of x: ragged last row tile is handled by Pallas (rows are independent,
    # output writeback is masked to the real extent).
    grid = (pl.cdiv(seq, tm),)
    full = lambda i: (0, 0)                        # weights / biases: single full block

    flops = 2 * seq * (d_model * h1 + h1 * h2 + h2 * h3 + h3 * n_pad)
    transcendentals = seq * n_pad + seq                                  # exp() + reciprocal
    bytes_accessed = (
        seq * d_model * 2                                                # x (bf16)
        + (d_model * h1 + h1 * h2 + h2 * h3 + h3 * n_pad) * 2            # weights (bf16)
        + (h1 + h2 + h3 + n_pad) * 4                                     # biases (f32)
        + seq * n_pad * 2                                                # output (bf16)
    )

    out = pl.pallas_call(
        _mlp_softmax_kernel,
        out_shape=jax.ShapeDtypeStruct((seq, n_pad), jnp.bfloat16),
        grid_spec=pltpu.PrefetchScalarGridSpec(
            num_scalar_prefetch=0,
            grid=grid,
            in_specs=[
                pl.BlockSpec((tm, d_model), lambda i: (i, 0)),           # x row tile
                pl.BlockSpec((d_model, h1), full),
                pl.BlockSpec((1, h1), full),
                pl.BlockSpec((h1, h2), full),
                pl.BlockSpec((1, h2), full),
                pl.BlockSpec((h2, h3), full),
                pl.BlockSpec((1, h3), full),
                pl.BlockSpec((h3, n_pad), full),
                pl.BlockSpec((1, n_pad), full),
            ],
            out_specs=pl.BlockSpec((tm, n_pad), lambda i: (i, 0)),
        ),
        compiler_params=pltpu.CompilerParams(
            dimension_semantics=("parallel",)),
        cost_estimate=pl.CostEstimate(
            flops=flops,
            transcendentals=transcendentals,
            bytes_accessed=bytes_accessed),
    )(x, w1, b1, w2, b2, w3, b3, w4, b4)

    # slice off padded classes; upcast only here if the caller wants f32
    return out[:, :n_out].astype(out_dtype)


def init_params(key, vocab_size, n_output, d_model, h1, h2, h3):
    """Deterministic synthetic parameters (same shapes as the PyTorch module), f32."""
    ks = jax.random.split(key, 9)

    def linear(kw, kb, fan_in, fan_out):
        bound = 1.0 / jnp.sqrt(fan_in)
        w = jax.random.uniform(kw, (fan_in, fan_out), jnp.float32, -bound, bound)
        b = jax.random.uniform(kb, (fan_out,), jnp.float32, -bound, bound)
        return w, b

    emb = jax.random.normal(ks[0], (vocab_size, d_model), jnp.float32)
    l1 = linear(ks[1], ks[2], d_model, h1)
    l2 = linear(ks[3], ks[4], h1, h2)
    l3 = linear(ks[5], ks[6], h2, h3)
    l4 = linear(ks[7], ks[8], h3, n_output)
    return emb, l1, l2, l3, l4


def reference_forward(inputs, raw_params):
    """Pure-JAX f32 reference of the PyTorch module (dropout == identity in eval)."""
    emb, (w1, b1), (w2, b2), (w3, b3), (w4, b4) = raw_params
    x = jnp.take(emb, inputs, axis=0)
    h = jax.nn.relu(x @ w1 + b1)
    h = jax.nn.relu(h @ w2 + b2)
    h = jax.nn.relu(h @ w3 + b3)
    logits = h @ w4 + b4
    return jax.nn.softmax(logits, axis=-1)


if __name__ == "__main__":
    # small shapes consistent with the module's structure
    VOCAB = 50
    D_MODEL = 128
    H1, H2, H3 = 256, 256, 128
    N_OUTPUT = 16
    SEQ = 300                      # spans 2 row tiles (auto tm -> 256) incl. a ragged last tile

    key = jax.random.PRNGKey(0)
    k_param, k_tok = jax.random.split(key)

    raw_params = init_params(k_param, VOCAB, N_OUTPUT, D_MODEL, H1, H2, H3)
    prepared = prepare_params(raw_params)         # one-time bf16 cast + class-axis pad (hoisted)
    token_ids = jax.random.randint(k_tok, (SEQ,), 0, VOCAB, dtype=jnp.int32)

    fwd = jax.jit(functools.partial(intent_classifier_forward, params=prepared))
    probs = fwd(token_ids)
    jax.block_until_ready(probs)

    ref = reference_forward(token_ids, raw_params)

    # sanity: correct shape, finite, rows sum to ~1 (bf16 output + approx reciprocal give
    # ~1e-3..1e-2 normalization slack), and close to the f32 reference.
    assert probs.shape == (SEQ, N_OUTPUT)
    assert bool(jnp.all(jnp.isfinite(probs)))
    assert bool(jnp.allclose(jnp.sum(probs, axis=-1), 1.0, atol=2e-2))
    assert bool(jnp.allclose(probs, ref, atol=3e-2))
    print("KERNEL_OK")
</pallas_src>

<mosaic_0001>
module attributes {stable_mosaic.version = 11 : i64} {
  func.func @_mlp_softmax_kernel(%arg0: i32, %arg1: memref<256x128xbf16, #tpu.memory_space<vmem>>, %arg2: memref<128x256xbf16, #tpu.memory_space<vmem>>, %arg3: memref<1x256xf32, #tpu.memory_space<vmem>>, %arg4: memref<256x256xbf16, #tpu.memory_space<vmem>>, %arg5: memref<1x256xf32, #tpu.memory_space<vmem>>, %arg6: memref<256x128xbf16, #tpu.memory_space<vmem>>, %arg7: memref<1x128xf32, #tpu.memory_space<vmem>>, %arg8: memref<128x128xbf16, #tpu.memory_space<vmem>>, %arg9: memref<1x128xf32, #tpu.memory_space<vmem>>, %arg10: memref<256x128xbf16, #tpu.memory_space<vmem>>) attributes {dimension_semantics = [#tpu.dimension_semantics<parallel>], iteration_bounds = array<i64: 2>, scalar_prefetch = 0 : i64, scratch_operands = 0 : i64, tpu.core_type = #tpu.core_type<tc>, window_params = [{transform_indices = @transform_0, window_bounds = array<i64: 256, 128>}, {pipeline_mode = #tpu.pipeline_mode<synchronous>, transform_indices = @transform_1, window_bounds = array<i64: 128, 256>}, {pipeline_mode = #tpu.pipeline_mode<synchronous>, transform_indices = @transform_2, window_bounds = array<i64: 1, 256>}, {pipeline_mode = #tpu.pipeline_mode<synchronous>, transform_indices = @transform_3, window_bounds = array<i64: 256, 256>}, {pipeline_mode = #tpu.pipeline_mode<synchronous>, transform_indices = @transform_4, window_bounds = array<i64: 1, 256>}, {pipeline_mode = #tpu.pipeline_mode<synchronous>, transform_indices = @transform_5, window_bounds = array<i64: 256, 128>}, {pipeline_mode = #tpu.pipeline_mode<synchronous>, transform_indices = @transform_6, window_bounds = array<i64: 1, 128>}, {pipeline_mode = #tpu.pipeline_mode<synchronous>, transform_indices = @transform_7, window_bounds = array<i64: 128, 128>}, {pipeline_mode = #tpu.pipeline_mode<synchronous>, transform_indices = @transform_8, window_bounds = array<i64: 1, 128>}, {transform_indices = @transform_9, window_bounds = array<i64: 256, 128>}]} {
    %c0 = arith.constant 0 : index
    %c0_0 = arith.constant 0 : index
    %0 = vector.load %arg1[%c0, %c0_0] : memref<256x128xbf16, #tpu.memory_space<vmem>>, vector<256x128xbf16>
    %c0_1 = arith.constant 0 : index
    %c0_2 = arith.constant 0 : index
    %1 = vector.load %arg2[%c0_1, %c0_2] : memref<128x256xbf16, #tpu.memory_space<vmem>>, vector<128x256xbf16>
    %cst = arith.constant dense<0.000000e+00> : vector<256x256xf32>
    %2 = tpu.matmul %0, %1, %cst {dimension_numbers = #tpu.dot_dimension_numbers<[1], [0], [0], [1], [0, 0, 1, 1], [], []>} : vector<256x128xbf16>, vector<128x256xbf16>, vector<256x256xf32> -> vector<256x256xf32>
    %c0_3 = arith.constant 0 : index
    %c0_4 = arith.constant 0 : index
    %3 = vector.load %arg3[%c0_3, %c0_4] : memref<1x256xf32, #tpu.memory_space<vmem>>, vector<1x256xf32>
    %4 = vector.broadcast %3 : vector<1x256xf32> to vector<256x256xf32>
    %5 = arith.addf %2, %4 : vector<256x256xf32>
    %cst_5 = arith.constant 0.000000e+00 : f32
    %6 = vector.broadcast %cst_5 : f32 to vector<256x256xf32>
    %7 = arith.maximumf %5, %6 : vector<256x256xf32>
    %8 = arith.truncf %7 : vector<256x256xf32> to vector<256x256xbf16>
    %c0_6 = arith.constant 0 : index
    %c0_7 = arith.constant 0 : index
    %9 = vector.load %arg4[%c0_6, %c0_7] : memref<256x256xbf16, #tpu.memory_space<vmem>>, vector<256x256xbf16>
    %cst_8 = arith.constant dense<0.000000e+00> : vector<256x256xf32>
    %10 = tpu.matmul %8, %9, %cst_8 {dimension_numbers = #tpu.dot_dimension_numbers<[1], [0], [0], [1], [0, 0, 1, 1], [], []>} : vector<256x256xbf16>, vector<256x256xbf16>, vector<256x256xf32> -> vector<256x256xf32>
    %c0_9 = arith.constant 0 : index
    %c0_10 = arith.constant 0 : index
    %11 = vector.load %arg5[%c0_9, %c0_10] : memref<1x256xf32, #tpu.memory_space<vmem>>, vector<1x256xf32>
    %12 = vector.broadcast %11 : vector<1x256xf32> to vector<256x256xf32>
    %13 = arith.addf %10, %12 : vector<256x256xf32>
    %cst_11 = arith.constant 0.000000e+00 : f32
    %14 = vector.broadcast %cst_11 : f32 to vector<256x256xf32>
    %15 = arith.maximumf %13, %14 : vector<256x256xf32>
    %16 = arith.truncf %15 : vector<256x256xf32> to vector<256x256xbf16>
    %c0_12 = arith.constant 0 : index
    %c0_13 = arith.constant 0 : index
    %17 = vector.load %arg6[%c0_12, %c0_13] : memref<256x128xbf16, #tpu.memory_space<vmem>>, vector<256x128xbf16>
    %cst_14 = arith.constant dense<0.000000e+00> : vector<256x128xf32>
    %18 = tpu.matmul %16, %17, %cst_14 {dimension_numbers = #tpu.dot_dimension_numbers<[1], [0], [0], [1], [0, 0, 1, 1], [], []>} : vector<256x256xbf16>, vector<256x128xbf16>, vector<256x128xf32> -> vector<256x128xf32>
    %c0_15 = arith.constant 0 : index
    %c0_16 = arith.constant 0 : index
    %19 = vector.load %arg7[%c0_15, %c0_16] : memref<1x128xf32, #tpu.memory_space<vmem>>, vector<1x128xf32>
    %20 = vector.broadcast %19 : vector<1x128xf32> to vector<256x128xf32>
    %21 = arith.addf %18, %20 : vector<256x128xf32>
    %cst_17 = arith.constant 0.000000e+00 : f32
    %22 = vector.broadcast %cst_17 : f32 to vector<256x128xf32>
    %23 = arith.maximumf %21, %22 : vector<256x128xf32>
    %24 = arith.truncf %23 : vector<256x128xf32> to vector<256x128xbf16>
    %c0_18 = arith.constant 0 : index
    %c0_19 = arith.constant 0 : index
    %25 = vector.load %arg8[%c0_18, %c0_19] : memref<128x128xbf16, #tpu.memory_space<vmem>>, vector<128x128xbf16>
    %cst_20 = arith.constant dense<0.000000e+00> : vector<256x128xf32>
    %26 = tpu.matmul %24, %25, %cst_20 {dimension_numbers = #tpu.dot_dimension_numbers<[1], [0], [0], [1], [0, 0, 1, 1], [], []>} : vector<256x128xbf16>, vector<128x128xbf16>, vector<256x128xf32> -> vector<256x128xf32>
    %c0_21 = arith.constant 0 : index
    %c0_22 = arith.constant 0 : index
    %27 = vector.load %arg9[%c0_21, %c0_22] : memref<1x128xf32, #tpu.memory_space<vmem>>, vector<1x128xf32>
    %28 = vector.broadcast %27 : vector<1x128xf32> to vector<256x128xf32>
    %29 = arith.addf %26, %28 : vector<256x128xf32>
    %cst_23 = arith.constant dense<0xFF800000> : vector<256xf32>
    %30 = vector.multi_reduction <maximumf>, %29, %cst_23 [1] : vector<256x128xf32> to vector<256xf32>
    %31 = vector.shape_cast %30 : vector<256xf32> to vector<256x1xf32>
    %32 = vector.broadcast %31 : vector<256x1xf32> to vector<256x128xf32>
    %33 = arith.subf %29, %32 : vector<256x128xf32>
    %34 = math.exp %33 : vector<256x128xf32>
    %cst_24 = arith.constant dense<0.000000e+00> : vector<256xf32>
    %35 = vector.multi_reduction <add>, %34, %cst_24 [1] : vector<256x128xf32> to vector<256xf32>
    %36 = vector.shape_cast %35 : vector<256xf32> to vector<256x1xf32>
    %37 = tpu.reciprocal %36 {approx = true} : vector<256x1xf32> -> vector<256x1xf32>
    %38 = vector.broadcast %37 : vector<256x1xf32> to vector<256x128xf32>
    %39 = arith.mulf %34, %38 : vector<256x128xf32>
    %40 = arith.truncf %39 : vector<256x128xf32> to vector<256x128xbf16>
    %c0_25 = arith.constant 0 : index
    %c0_26 = arith.constant 0 : index
    %41 = vector.load %arg10[%c0_25, %c0_26] : memref<256x128xbf16, #tpu.memory_space<vmem>>, vector<256x128xbf16>
    tpu.vector_store %arg10[%c0_25, %c0_26], %40 {strides = array<i32>} : memref<256x128xbf16, #tpu.memory_space<vmem>>, vector<256x128xbf16>,
    return
  }
  func.func @transform_0(%arg0: i32) -> (i32, i32) {
    %c0_i32 = arith.constant 0 : i32
    %c0_i32_0 = arith.constant 0 : i32
    return %arg0, %c0_i32 : i32, i32
  }
  func.func @transform_1(%arg0: i32) -> (i32, i32) {
    %c0_i32 = arith.constant 0 : i32
    %c0_i32_0 = arith.constant 0 : i32
    %c0_i32_1 = arith.constant 0 : i32
    return %c0_i32, %c0_i32_0 : i32, i32
  }
  func.func @transform_2(%arg0: i32) -> (i32, i32) {
    %c0_i32 = arith.constant 0 : i32
    %c0_i32_0 = arith.constant 0 : i32
    %c0_i32_1 = arith.constant 0 : i32
    return %c0_i32, %c0_i32_0 : i32, i32
  }
  func.func @transform_3(%arg0: i32) -> (i32, i32) {
    %c0_i32 = arith.constant 0 : i32
    %c0_i32_0 = arith.constant 0 : i32
    %c0_i32_1 = arith.constant 0 : i32
    return %c0_i32, %c0_i32_0 : i32, i32
  }
  func.func @transform_4(%arg0: i32) -> (i32, i32) {
    %c0_i32 = arith.constant 0 : i32
    %c0_i32_0 = arith.constant 0 : i32
    %c0_i32_1 = arith.constant 0 : i32
    return %c0_i32, %c0_i32_0 : i32, i32
  }
  func.func @transform_5(%arg0: i32) -> (i32, i32) {
    %c0_i32 = arith.constant 0 : i32
    %c0_i32_0 = arith.constant 0 : i32
    %c0_i32_1 = arith.constant 0 : i32
    return %c0_i32, %c0_i32_0 : i32, i32
  }
  func.func @transform_6(%arg0: i32) -> (i32, i32) {
    %c0_i32 = arith.constant 0 : i32
    %c0_i32_0 = arith.constant 0 : i32
    %c0_i32_1 = arith.constant 0 : i32
    return %c0_i32, %c0_i32_0 : i32, i32
  }
  func.func @transform_7(%arg0: i32) -> (i32, i32) {
    %c0_i32 = arith.constant 0 : i32
    %c0_i32_0 = arith.constant 0 : i32
    %c0_i32_1 = arith.constant 0 : i32
    return %c0_i32, %c0_i32_0 : i32, i32
  }
  func.func @transform_8(%arg0: i32) -> (i32, i32) {
    %c0_i32 = arith.constant 0 : i32
    %c0_i32_0 = arith.constant 0 : i32
    %c0_i32_1 = arith.constant 0 : i32
    return %c0_i32, %c0_i32_0 : i32, i32
  }
  func.func @transform_9(%arg0: i32) -> (i32, i32) {
    %c0_i32 = arith.constant 0 : i32
    %c0_i32_0 = arith.constant 0 : i32
    return %arg0, %c0_i32 : i32, i32
  }
}

</mosaic_0001>

<llo_original>
// kernel: intent_classifier_forward.1
$region0: #{intent_classifier_forward.1}
  #allocation0 [shape = 'u32[]', space=smem, size = 0x4, offset = 0x4, fixed_abs, tag = 'smem constant byte address 0x4 - core index']
  #allocation1 [shape = 'u32[144,128]{1,0:T(1,128)}', space=vmem, size = 0x12000, scoped, tag = 'internal scratch']
  %s0 = inlined_call_operand.vmem [shape: bf16[300,128], index: 0, kind: input, shape index: {}]
  %s1 = inlined_call_operand.vmem [shape: bf16[128,256], index: 1, kind: input, shape index: {}]
  %s2 = inlined_call_operand.vmem [shape: f32[1,256], index: 2, kind: input, shape index: {}]
  %s3 = inlined_call_operand.vmem [shape: bf16[256,256], index: 3, kind: input, shape index: {}]
  %s4 = inlined_call_operand.vmem [shape: f32[1,256], index: 4, kind: input, shape index: {}]
  %s5 = inlined_call_operand.vmem [shape: bf16[256,128], index: 5, kind: input, shape index: {}]
  %s6 = inlined_call_operand.vmem [shape: f32[1,128], index: 6, kind: input, shape index: {}]
  %s7 = inlined_call_operand.vmem [shape: bf16[128,128], index: 7, kind: input, shape index: {}]
  %s8 = inlined_call_operand.vmem [shape: f32[1,128], index: 8, kind: input, shape index: {}]
  %s9 = inlined_call_operand.vmem [shape: bf16[300,128], index: 9, kind: output, shape index: {}]
  %s10 = sld [smem:[#allocation0]]
  $region113: #{intent_classifier_forward.1} parent=0
    _
  %s12 = ssub.s32 1, %s10
  %s13 = scalar_select 0, %s12, %s10
  $region1: #{intent_classifier_forward.1} parent=0
    #allocation2 [shape = 'u8[131072]{0}', space=vmem, size = 0x20000, scoped, tag = 'output window, operand 0']
    loop: start=0, step=1, limit=4
    $region2: #{intent_classifier_forward.1} parent=1 // loop_pre_header
      _
    $region3: #{intent_classifier_forward.1} parent=1 // loop_header
      %s15 = sphi 0, %s19
      %p16 = scmp.ge.s32.totalorder %s15, 4
      %s25 = sphi 0, %s27
      %s28 = sphi 0, %s25
      %s29 = sphi 0, %s28
      %s45 = sphi 0, %s29
      %s49 = sphi 0, %s49
      %s51 = sphi 0, %s49
      %s52 = sphi 0, %s51
      %s66 = sphi 0, %s52
      %s70 = sphi 0, %s70
      %s72 = sphi 0, %s70
      %s73 = sphi 0, %s72
      %s87 = sphi 0, %s73
      %s91 = sphi 0, %s91
      %s93 = sphi 0, %s91
      %s94 = sphi 0, %s93
      %s108 = sphi 0, %s94
      %s112 = sphi 0, %s112
      %s114 = sphi 0, %s112
      %s115 = sphi 0, %s114
      %s129 = sphi 0, %s115
      %s133 = sphi 0, %s133
      %s135 = sphi 0, %s133
      %s136 = sphi 0, %s135
      %s150 = sphi 0, %s136
      %s154 = sphi 0, %s154
      %s156 = sphi 0, %s154
      %s157 = sphi 0, %s156
      %s171 = sphi 0, %s157
      %s175 = sphi 0, %s175
      %s177 = sphi 0, %s175
      %s178 = sphi 0, %s177
      %s192 = sphi 0, %s178
      %s196 = sphi 0, %s196
      %s198 = sphi 0, %s196
      %s199 = sphi 0, %s198
      %s213 = sphi 0, %s199
      %s219 = sphi 0, %s221
      %s222 = sphi 0, %s219
      %s223 = sphi 0, %s222
      %s239 = sphi 0, %s223
    $region4: #{intent_classifier_forward.1} parent=1 // loop_header_branch
      %18 = sbr.rel (%p16) target = $region8
    $region5: #{intent_classifier_forward.1} parent=1 // loop_body
      %s20 = ssub.s32 %s15, 1
      %s21 = ssub.s32 %s15, 2
      %s22 = sadd.s32 %s15, 1
      %s23 = ssub.s32 %s15, %s22
      %p24 = scmp.eq.s32.totalorder %s23, 0
      %s26 = sadd.s32 %s25, 1
      %s27 = scalar_select %p24, %s25, %s26
      %p30 = pneg %p24
      %p31 = scmp.eq.s32.totalorder %s15, 1
      %p32 = por %p30, %p31
      %p33 = scmp.ne.s32.totalorder %s25, %s28
      %p34 = scmp.eq.s32.totalorder %s15, 0
      %p35 = por %p33, %p34
      %p36 = scmp.ne.s32.totalorder %s25, %s28
      %p37 = scmp.eq.s32.totalorder %s20, 1
      %p38 = por %p36, %p37
      %p39 = scmp.ne.s32.totalorder %s28, %s29
      %p40 = scmp.eq.s32.totalorder %s20, 0
      %p41 = por %p39, %p40
      %p42 = scmp.ne.s32.totalorder %s28, %s29
      %p43 = scmp.eq.s32.totalorder %s21, 1
      %p44 = por %p42, %p43
      %p46 = scmp.ne.s32.totalorder %s29, %s45
      %p47 = scmp.eq.s32.totalorder %s21, 0
      %p48 = por %p46, %p47
      %s50 = sadd.s32 %s49, 1
      %p53 = scmp.eq.s32.totalorder %s15, 1
      %p54 = scmp.ne.s32.totalorder %s49, %s51
      %p55 = scmp.eq.s32.totalorder %s15, 0
      %p56 = por %p54, %p55
      %p57 = scmp.ne.s32.totalorder %s49, %s51
      %p58 = scmp.eq.s32.totalorder %s20, 1
      %p59 = por %p57, %p58
      %p60 = scmp.ne.s32.totalorder %s51, %s52
      %p61 = scmp.eq.s32.totalorder %s20, 0
      %p62 = por %p60, %p61
      %p63 = scmp.ne.s32.totalorder %s51, %s52
      %p64 = scmp.eq.s32.totalorder %s21, 1
      %p65 = por %p63, %p64
      %p67 = scmp.ne.s32.totalorder %s52, %s66
      %p68 = scmp.eq.s32.totalorder %s21, 0
      %p69 = por %p67, %p68
      %s71 = sadd.s32 %s70, 1
      %p74 = scmp.eq.s32.totalorder %s15, 1
      %p75 = scmp.ne.s32.totalorder %s70, %s72
      %p76 = scmp.eq.s32.totalorder %s15, 0
      %p77 = por %p75, %p76
      %p78 = scmp.ne.s32.totalorder %s70, %s72
      %p79 = scmp.eq.s32.totalorder %s20, 1
      %p80 = por %p78, %p79
      %p81 = scmp.ne.s32.totalorder %s72, %s73
      %p82 = scmp.eq.s32.totalorder %s20, 0
      %p83 = por %p81, %p82
      %p84 = scmp.ne.s32.totalorder %s72, %s73
      %p85 = scmp.eq.s32.totalorder %s21, 1
      %p86 = por %p84, %p85
      %p88 = scmp.ne.s32.totalorder %s73, %s87
      %p89 = scmp.eq.s32.totalorder %s21, 0
      %p90 = por %p88, %p89
      %s92 = sadd.s32 %s91, 1
      %p95 = scmp.eq.s32.totalorder %s15, 1
      %p96 = scmp.ne.s32.totalorder %s91, %s93
      %p97 = scmp.eq.s32.totalorder %s15, 0
      %p98 = por %p96, %p97
      %p99 = scmp.ne.s32.totalorder %s91, %s93
      %p100 = scmp.eq.s32.totalorder %s20, 1
      %p101 = por %p99, %p100
      %p102 = scmp.ne.s32.totalorder %s93, %s94
      %p103 = scmp.eq.s32.totalorder %s20, 0
      %p104 = por %p102, %p103
      %p105 = scmp.ne.s32.totalorder %s93, %s94
      %p106 = scmp.eq.s32.totalorder %s21, 1
      %p107 = por %p105, %p106
      %p109 = scmp.ne.s32.totalorder %s94, %s108
      %p110 = scmp.eq.s32.totalorder %s21, 0
      %p111 = por %p109, %p110
      %s113 = sadd.s32 %s112, 1
      %p116 = scmp.eq.s32.totalorder %s15, 1
      %p117 = scmp.ne.s32.totalorder %s112, %s114
      %p118 = scmp.eq.s32.totalorder %s15, 0
      %p119 = por %p117, %p118
      %p120 = scmp.ne.s32.totalorder %s112, %s114
      %p121 = scmp.eq.s32.totalorder %s20, 1
      %p122 = por %p120, %p121
      %p123 = scmp.ne.s32.totalorder %s114, %s115
      %p124 = scmp.eq.s32.totalorder %s20, 0
      %p125 = por %p123, %p124
      %p126 = scmp.ne.s32.totalorder %s114, %s115
      %p127 = scmp.eq.s32.totalorder %s21, 1
      %p128 = por %p126, %p127
      %p130 = scmp.ne.s32.totalorder %s115, %s129
      %p131 = scmp.eq.s32.totalorder %s21, 0
      %p132 = por %p130, %p131
      %s134 = sadd.s32 %s133, 1
      %p137 = scmp.eq.s32.totalorder %s15, 1
      %p138 = scmp.ne.s32.totalorder %s133, %s135
      %p139 = scmp.eq.s32.totalorder %s15, 0
      %p140 = por %p138, %p139
      %p141 = scmp.ne.s32.totalorder %s133, %s135
      %p142 = scmp.eq.s32.totalorder %s20, 1
      %p143 = por %p141, %p142
      %p144 = scmp.ne.s32.totalorder %s135, %s136
      %p145 = scmp.eq.s32.totalorder %s20, 0
      %p146 = por %p144, %p145
      %p147 = scmp.ne.s32.totalorder %s135, %s136
      %p148 = scmp.eq.s32.totalorder %s21, 1
      %p149 = por %p147, %p148
      %p151 = scmp.ne.s32.totalorder %s136, %s150
      %p152 = scmp.eq.s32.totalorder %s21, 0
      %p153 = por %p151, %p152
      %s155 = sadd.s32 %s154, 1
      %p158 = scmp.eq.s32.totalorder %s15, 1
      %p159 = scmp.ne.s32.totalorder %s154, %s156
      %p160 = scmp.eq.s32.totalorder %s15, 0
      %p161 = por %p159, %p160
      %p162 = scmp.ne.s32.totalorder %s154, %s156
      %p163 = scmp.eq.s32.totalorder %s20, 1
      %p164 = por %p162, %p163
      %p165 = scmp.ne.s32.totalorder %s156, %s157
      %p166 = scmp.eq.s32.totalorder %s20, 0
      %p167 = por %p165, %p166
      %p168 = scmp.ne.s32.totalorder %s156, %s157
      %p169 = scmp.eq.s32.totalorder %s21, 1
      %p170 = por %p168, %p169
      %p172 = scmp.ne.s32.totalorder %s157, %s171
      %p173 = scmp.eq.s32.totalorder %s21, 0
      %p174 = por %p172, %p173
      %s176 = sadd.s32 %s175, 1
      %p179 = scmp.eq.s32.totalorder %s15, 1
      %p180 = scmp.ne.s32.totalorder %s175, %s177
      %p181 = scmp.eq.s32.totalorder %s15, 0
      %p182 = por %p180, %p181
      %p183 = scmp.ne.s32.totalorder %s175, %s177
      %p184 = scmp.eq.s32.totalorder %s20, 1
      %p185 = por %p183, %p184
      %p186 = scmp.ne.s32.totalorder %s177, %s178
      %p187 = scmp.eq.s32.totalorder %s20, 0
      %p188 = por %p186, %p187
      %p189 = scmp.ne.s32.totalorder %s177, %s178
      %p190 = scmp.eq.s32.totalorder %s21, 1
      %p191 = por %p189, %p190
      %p193 = scmp.ne.s32.totalorder %s178, %s192
      %p194 = scmp.eq.s32.totalorder %s21, 0
      %p195 = por %p193, %p194
      %s197 = sadd.s32 %s196, 1
      %p200 = scmp.eq.s32.totalorder %s15, 1
      %p201 = scmp.ne.s32.totalorder %s196, %s198
      %p202 = scmp.eq.s32.totalorder %s15, 0
      %p203 = por %p201, %p202
      %p204 = scmp.ne.s32.totalorder %s196, %s198
      %p205 = scmp.eq.s32.totalorder %s20, 1
      %p206 = por %p204, %p205
      %p207 = scmp.ne.s32.totalorder %s198, %s199
      %p208 = scmp.eq.s32.totalorder %s20, 0
      %p209 = por %p207, %p208
      %p210 = scmp.ne.s32.totalorder %s198, %s199
      %p211 = scmp.eq.s32.totalorder %s21, 1
      %p212 = por %p210, %p211
      %p214 = scmp.ne.s32.totalorder %s199, %s213
      %p215 = scmp.eq.s32.totalorder %s21, 0
      %p216 = por %p214, %p215
      %s217 = ssub.s32 %s15, %s22
      %p218 = scmp.eq.s32.totalorder %s217, 0
      %s220 = sadd.s32 %s219, 1
      %s221 = scalar_select %p218, %s219, %s220
      %p224 = pneg %p218
      %p225 = scmp.eq.s32.totalorder %s15, 1
      %p226 = por %p224, %p225
      %p227 = scmp.ne.s32.totalorder %s219, %s222
      %p228 = scmp.eq.s32.totalorder %s15, 0
      %p229 = por %p227, %p228
      %p230 = scmp.ne.s32.totalorder %s219, %s222
      %p231 = scmp.eq.s32.totalorder %s20, 1
      %p232 = por %p230, %p231
      %p233 = scmp.ne.s32.totalorder %s222, %s223
      %p234 = scmp.eq.s32.totalorder %s20, 0
      %p235 = por %p233, %p234
      %p236 = scmp.ne.s32.totalorder %s222, %s223
      %p237 = scmp.eq.s32.totalorder %s21, 1
      %p238 = por %p236, %p237
      %p240 = scmp.ne.s32.totalorder %s223, %s239
      %p241 = scmp.eq.s32.totalorder %s21, 0
      %p242 = por %p240, %p241
      %p243 = scmp.le.s32.totalorder 1, %s15
      %p244 = scmp.lt.s32.totalorder %s15, 3
      %p245 = pnand %p243, %p244
      %p246 = pneg %p245
      // Predicated region
      $region9: #{intent_classifier_forward.1} parent=5 // pred_check
        _
      $region10: #{intent_classifier_forward.1} parent=5 // pred_check_branch
        %248 = sbr.rel (%p245) target = $region12
      $region11: #{intent_classifier_forward.1} parent=5 // pred_region
        %s249 = ssub.s32 %s15, 1
        // Predicated region
        $region13: #{intent_classifier_forward.1} parent=11 // pred_check
          %p250 = pneg %p62
        $region14: #{intent_classifier_forward.1} parent=11 // pred_check_branch
          %252 = sbr.rel (%p250) target = $region16
        $region15: #{intent_classifier_forward.1} parent=11 // pred_region
          _
        $region16: #{intent_classifier_forward.1} parent=11 // pred_fallthru
          _
        // Predicated region
        $region17: #{intent_classifier_forward.1} parent=11 // pred_check
          %p253 = pneg %p83
        $region18: #{intent_classifier_forward.1} parent=11 // pred_check_branch
          %255 = sbr.rel (%p253) target = $region20
        $region19: #{intent_classifier_forward.1} parent=11 // pred_region
          _
        $region20: #{intent_classifier_forward.1} parent=11 // pred_fallthru
          _
        // Predicated region
        $region21: #{intent_classifier_forward.1} parent=11 // pred_check
          %p256 = pneg %p104
        $region22: #{intent_classifier_forward.1} parent=11 // pred_check_branch
          %258 = sbr.rel (%p256) target = $region24
        $region23: #{intent_classifier_forward.1} parent=11 // pred_region
          _
        $region24: #{intent_classifier_forward.1} parent=11 // pred_fallthru
          _
        // Predicated region
        $region25: #{intent_classifier_forward.1} parent=11 // pred_check
          %p259 = pneg %p125
        $region26: #{intent_classifier_forward.1} parent=11 // pred_check_branch
          %261 = sbr.rel (%p259) target = $region28
        $region27: #{intent_classifier_forward.1} parent=11 // pred_region
          _
        $region28: #{intent_classifier_forward.1} parent=11 // pred_fallthru
          _
        // Predicated region
        $region29: #{intent_classifier_forward.1} parent=11 // pred_check
          %p262 = pneg %p146
        $region30: #{intent_classifier_forward.1} parent=11 // pred_check_branch
          %264 = sbr.rel (%p262) target = $region32
        $region31: #{intent_classifier_forward.1} parent=11 // pred_region
          _
        $region32: #{intent_classifier_forward.1} parent=11 // pred_fallthru
          _
        // Predicated region
        $region33: #{intent_classifier_forward.1} parent=11 // pred_check
          %p265 = pneg %p167
        $region34: #{intent_classifier_forward.1} parent=11 // pred_check_branch
          %267 = sbr.rel (%p265) target = $region36
        $region35: #{intent_classifier_forward.1} parent=11 // pred_region
          _
        $region36: #{intent_classifier_forward.1} parent=11 // pred_fallthru
          _
        // Predicated region
        $region37: #{intent_classifier_forward.1} parent=11 // pred_check
          %p268 = pneg %p188
        $region38: #{intent_classifier_forward.1} parent=11 // pred_check_branch
          %270 = sbr.rel (%p268) target = $region40
        $region39: #{intent_classifier_forward.1} parent=11 // pred_region
          _
        $region40: #{intent_classifier_forward.1} parent=11 // pred_fallthru
          _
        // Predicated region
        $region41: #{intent_classifier_forward.1} parent=11 // pred_check
          %p271 = pneg %p209
        $region42: #{intent_classifier_forward.1} parent=11 // pred_check_branch
          %273 = sbr.rel (%p271) target = $region44
        $region43: #{intent_classifier_forward.1} parent=11 // pred_region
          _
        $region44: #{intent_classifier_forward.1} parent=11 // pred_fallthru
          _
      $region12: #{intent_classifier_forward.1} parent=5 // pred_fallthru
        _
      %p274 = scmp.lt.s32.totalorder %s15, 2
      // Predicated region
      $region45: #{intent_classifier_forward.1} parent=5 // pred_check
        %p275 = pneg %p274
      $region46: #{intent_classifier_forward.1} parent=5 // pred_check_branch
        %277 = sbr.rel (%p275) target = $region48
      $region47: #{intent_classifier_forward.1} parent=5 // pred_region
        // Predicated region
        $region49: #{intent_classifier_forward.1} parent=47 // pred_check
          %p278 = pneg %p35
        $region50: #{intent_classifier_forward.1} parent=47 // pred_check_branch
          %280 = sbr.rel (%p278) target = $region52
        $region51: #{intent_classifier_forward.1} parent=47 // pred_region
          %s281 = smul.u32 32, %s15
          %s282 = ssub.s32 38, %s281
          %p283 = scmp.lt.s32.totalorder %s282, 32
          %s284 = scalar_select %p283, %s282, 32
          %s285 = smul.u32 64, %s284
          %p286 = scmp.lt.s32.totalorder %s281, 37
          %s287 = scalar_select %p286, %s281, 37
          %s288 = smul.addr %s287, 4
          %s289 = scalar_lea.vmem %s0, %s288
          %s290 = smul.u32 32, %s15
          %s291 = ssub.s32 38, %s290
          %p292 = scmp.lt.s32.totalorder %s291, 32
          %s293 = scalar_select %p292, %s291, 32
          %s294 = smul.u32 64, %s293
        $region52: #{intent_classifier_forward.1} parent=47 // pred_fallthru
          _
      $region48: #{intent_classifier_forward.1} parent=5 // pred_fallthru
        _
      %p295 = scmp.le.s32.totalorder 1, %s15
      %p296 = scmp.lt.s32.totalorder %s15, 3
      %p297 = pnand %p295, %p296
      %p298 = pneg %p297
      // Predicated region
      $region53: #{intent_classifier_forward.1} parent=5 // pred_check
        _
      $region54: #{intent_classifier_forward.1} parent=5 // pred_check_branch
        %300 = sbr.rel (%p297) target = $region56
      $region55: #{intent_classifier_forward.1} parent=5 // pred_region
        %s301 = ssub.s32 %s15, 1
        %s302 = smul.u32 32, %s20
        %s303 = ssub.s32 38, %s302
        %p304 = scmp.lt.s32.totalorder %s303, 32
        %s305 = scalar_select %p304, %s303, 32
        %s306 = smul.u32 64, %s305
        %p307 = scmp.lt.s32.totalorder %s302, 37
        %s308 = scalar_select %p307, %s302, 37
        %s309 = smul.addr %s308, 4
        %s310 = scalar_lea.vmem %s0, %s309
        %p311 = pneg %p41
        %p312 = pneg %p38
        %p313 = pneg %p62
        %p314 = pneg %p59
        %p315 = pneg %p83
        %p316 = pneg %p80
        %p317 = pneg %p104
        %p318 = pneg %p101
        %p319 = pneg %p125
        %p320 = pneg %p122
        %p321 = pneg %p146
        %p322 = pneg %p143
        %p323 = pneg %p167
        %p324 = pneg %p164
        %p325 = pneg %p188
        %p326 = pneg %p185
        %p327 = pneg %p209
        %p328 = pneg %p206
        %p329 = pneg %p235
        %p330 = pneg %p232
        %s331 = sand.u32 %s222, 1
        %s332 = sand.u32 %s222, 1
        %s333 = smul.addr %s332, 128
        %s334 = scalar_lea.vmem [#allocation2], %s333
        %s335 = smul.u32 32, %s20
        %s336 = ssub.s32 38, %s335
        %p337 = scmp.lt.s32.totalorder %s336, 32
        %s338 = scalar_select %p337, %s336, 32
        %s339 = smul.u32 64, %s338
        %p340 = scmp.lt.s32.totalorder %s335, 37
        %s341 = scalar_select %p340, %s335, 37
        %s342 = smul.addr %s341, 4
        %s343 = scalar_lea.vmem %s0, %s342
        %s344 = smul.u32 32, %s20
        %s345 = ssub.s32 38, %s344
        %p346 = scmp.lt.s32.totalorder %s345, 32
        %s347 = scalar_select %p346, %s345, 32
        %s348 = smul.u32 64, %s347
        %s349 = smul.u32 32, %s20
        %s350 = ssub.s32 38, %s349
        %p351 = scmp.lt.s32.totalorder %s350, 32
        %s352 = scalar_select %p351, %s350, 32
        %s353 = smul.u32 64, %s352
        %v355 = vld [vmem:[%s343] sm:$0xf]
        %v356 = vld [vmem:[%s343 + $0x4] sm:$0xf]
        %v357 = vld [vmem:[%s343 + $0x8] sm:$0xf]
        %v358 = vld [vmem:[%s343 + $0xc] sm:$0xf]
        %v359 = vld [vmem:[%s343 + $0x10] sm:$0xf]
        %v360 = vld [vmem:[%s343 + $0x14] sm:$0xf]
        %v361 = vld [vmem:[%s343 + $0x18] sm:$0xf]
        %v362 = vld [vmem:[%s343 + $0x1c] sm:$0xf]
        %v363 = vld [vmem:[%s343 + $0x20] sm:$0xf]
        %v364 = vld [vmem:[%s343 + $0x24] sm:$0xf]
        %v365 = vld [vmem:[%s343 + $0x28] sm:$0xf]
        %v366 = vld [vmem:[%s343 + $0x2c] sm:$0xf]
        %v367 = vld [vmem:[%s343 + $0x30] sm:$0xf]
        %v368 = vld [vmem:[%s343 + $0x34] sm:$0xf]
        %v369 = vld [vmem:[%s343 + $0x38] sm:$0xf]
        %v370 = vld [vmem:[%s343 + $0x3c] sm:$0xf]
        %v371 = vld [vmem:[%s343 + $0x40] sm:$0xf]
        %v372 = vld [vmem:[%s343 + $0x44] sm:$0xf]
        %v373 = vld [vmem:[%s343 + $0x48] sm:$0xf]
        %v374 = vld [vmem:[%s343 + $0x4c] sm:$0xf]
        %v375 = vld [vmem:[%s343 + $0x50] sm:$0xf]
        %v376 = vld [vmem:[%s343 + $0x54] sm:$0xf]
        %v377 = vld [vmem:[%s343 + $0x58] sm:$0xf]
        %v378 = vld [vmem:[%s343 + $0x5c] sm:$0xf]
        %v379 = vld [vmem:[%s343 + $0x60] sm:$0xf]
        %v380 = vld [vmem:[%s343 + $0x64] sm:$0xf]
        %v381 = vld [vmem:[%s343 + $0x68] sm:$0xf]
        %v382 = vld [vmem:[%s343 + $0x6c] sm:$0xf]
        %v383 = vld [vmem:[%s343 + $0x70] sm:$0xf]
        %v384 = vld [vmem:[%s343 + $0x74] sm:$0xf]
        %v385 = vld [vmem:[%s343 + $0x78] sm:$0xf]
        %v386 = vld [vmem:[%s343 + $0x7c] sm:$0xf]
        %v387 = vld [vmem:[%s1] sm:$0xff]
        %v388 = vld [vmem:[%s1 + $0x8] sm:$0xff]
        %v389 = vld [vmem:[%s1 + $0x10] sm:$0xff]
        %v390 = vld [vmem:[%s1 + $0x18] sm:$0xff]
        %v391 = vld [vmem:[%s1 + $0x20] sm:$0xff]
        %v392 = vld [vmem:[%s1 + $0x28] sm:$0xff]
        %v393 = vld [vmem:[%s1 + $0x30] sm:$0xff]
        %v394 = vld [vmem:[%s1 + $0x38] sm:$0xff]
        %v395 = vld [vmem:[%s1 + $0x40] sm:$0xff]
        %v396 = vld [vmem:[%s1 + $0x48] sm:$0xff]
        %v397 = vld [vmem:[%s1 + $0x50] sm:$0xff]
        %v398 = vld [vmem:[%s1 + $0x58] sm:$0xff]
        %v399 = vld [vmem:[%s1 + $0x60] sm:$0xff]
        %v400 = vld [vmem:[%s1 + $0x68] sm:$0xff]
        %v401 = vld [vmem:[%s1 + $0x70] sm:$0xff]
        %v402 = vld [vmem:[%s1 + $0x78] sm:$0xff]
        %v403 = vld [vmem:[%s2] sm:$0x3]
        %v405 = vlaneseq
        %v406 = vshrl.u32 %v405, 7
        %v407 = vsub.s32 0, %v406
        %v408 = vrot.slane %v403, %v407
        %v409 = vlaneseq
        %v410 = vshrl.u32 %v409, 7
        %v411 = vsub.s32 1, %v410
        %v412 = vrot.slane %v403, %v411
        %v447 = vunpack.c.l.b16 %v355
        %v448 = vunpack.c.l.b16 %v356
        %v449 = vunpack.c.l.b16 %v357
        %v450 = vunpack.c.l.b16 %v358
        %v451 = vunpack.c.l.b16 %v359
        %v452 = vunpack.c.l.b16 %v360
        %v453 = vunpack.c.l.b16 %v361
        %v454 = vunpack.c.l.b16 %v362
        %v455 = vunpack.c.l.b16 %v363
        %v456 = vunpack.c.l.b16 %v364
        %v457 = vunpack.c.l.b16 %v365
        %v458 = vunpack.c.l.b16 %v366
        %v459 = vunpack.c.l.b16 %v367
        %v460 = vunpack.c.l.b16 %v368
        %v461 = vunpack.c.l.b16 %v369
        %v462 = vunpack.c.l.b16 %v370
        %v463 = vunpack.c.l.b16 %v371
        %v464 = vunpack.c.l.b16 %v372
        %v465 = vunpack.c.l.b16 %v373
        %v466 = vunpack.c.l.b16 %v374
        %v467 = vunpack.c.l.b16 %v375
        %v468 = vunpack.c.l.b16 %v376
        %v469 = vunpack.c.l.b16 %v377
        %v470 = vunpack.c.l.b16 %v378
        %v471 = vunpack.c.l.b16 %v379
        %v472 = vunpack.c.l.b16 %v380
        %v473 = vunpack.c.l.b16 %v381
        %v474 = vunpack.c.l.b16 %v382
        %v475 = vunpack.c.l.b16 %v383
        %v476 = vunpack.c.l.b16 %v384
        %v477 = vunpack.c.l.b16 %v385
        %v478 = vunpack.c.l.b16 %v386
        %v479 = vpack.c.b16 %v448, %v447
        %v480 = vpack.c.b16 %v450, %v449
        %v481 = vpack.c.b16 %v452, %v451
        %v482 = vpack.c.b16 %v454, %v453
        %v483 = vpack.c.b16 %v456, %v455
        %v484 = vpack.c.b16 %v458, %v457
        %v485 = vpack.c.b16 %v460, %v459
        %v486 = vpack.c.b16 %v462, %v461
        %v487 = vpack.c.b16 %v464, %v463
        %v488 = vpack.c.b16 %v466, %v465
        %v489 = vpack.c.b16 %v468, %v467
        %v490 = vpack.c.b16 %v470, %v469
        %v491 = vpack.c.b16 %v472, %v471
        %v492 = vpack.c.b16 %v474, %v473
        %v493 = vpack.c.b16 %v476, %v475
        %v494 = vpack.c.b16 %v478, %v477
        %v527 = vunpack.c.l.b16 %v387
        %v528 = vunpack.c.h.b16 %v387
        %v529 = vunpack.c.l.b16 %v388
        %v530 = vunpack.c.h.b16 %v388
        %v531 = vunpack.c.l.b16 %v389
        %v532 = vunpack.c.h.b16 %v389
        %v533 = vunpack.c.l.b16 %v390
        %v534 = vunpack.c.h.b16 %v390
        %v535 = vunpack.c.l.b16 %v391
        %v536 = vunpack.c.h.b16 %v391
        %v537 = vunpack.c.l.b16 %v392
        %v538 = vunpack.c.h.b16 %v392
        %v539 = vunpack.c.l.b16 %v393
        %v540 = vunpack.c.h.b16 %v393
        %v541 = vunpack.c.l.b16 %v394
        %v542 = vunpack.c.h.b16 %v394
        %v543 = vunpack.c.l.b16 %v395
        %v544 = vunpack.c.h.b16 %v395
        %v545 = vunpack.c.l.b16 %v396
        %v546 = vunpack.c.h.b16 %v396
        %v547 = vunpack.c.l.b16 %v397
        %v548 = vunpack.c.h.b16 %v397
        %v549 = vunpack.c.l.b16 %v398
        %v550 = vunpack.c.h.b16 %v398
        %v551 = vunpack.c.l.b16 %v399
        %v552 = vunpack.c.h.b16 %v399
        %v553 = vunpack.c.l.b16 %v400
        %v554 = vunpack.c.h.b16 %v400
        %v555 = vunpack.c.l.b16 %v401
        %v556 = vunpack.c.h.b16 %v401
        %v557 = vunpack.c.l.b16 %v402
        %v558 = vunpack.c.h.b16 %v402
        %v559 = vpack.c.b16 %v529, %v527
        %v560 = vpack.c.b16 %v530, %v528
        %v561 = vpack.c.b16 %v533, %v531
        %v562 = vpack.c.b16 %v534, %v532
        %v563 = vpack.c.b16 %v537, %v535
        %v564 = vpack.c.b16 %v538, %v536
        %v565 = vpack.c.b16 %v541, %v539
        %v566 = vpack.c.b16 %v542, %v540
        %v567 = vpack.c.b16 %v545, %v543
        %v568 = vpack.c.b16 %v546, %v544
        %v569 = vpack.c.b16 %v549, %v547
        %v570 = vpack.c.b16 %v550, %v548
        %v571 = vpack.c.b16 %v553, %v551
        %v572 = vpack.c.b16 %v554, %v552
        %v573 = vpack.c.b16 %v557, %v555
        %v574 = vpack.c.b16 %v558, %v556
        %591 = vmatprep.subr.bf16.mxu0 %v560
        %592 = vmatpush1.bf16.msra.mxu0 %v559
        %593 = vmatprep.subr.bf16.mxu0 %v562
        %594 = vmatpush1.bf16.msra.mxu0 %v561
        %595 = vmatprep.subr.bf16.mxu0 %v564
        %596 = vmatpush1.bf16.msra.mxu0 %v563
        %597 = vmatprep.subr.bf16.mxu0 %v566
        %598 = vmatpush1.bf16.msra.mxu0 %v565
        %599 = vmatprep.subr.bf16.mxu0 %v568
        %600 = vmatpush1.bf16.msra.mxu0 %v567
        %601 = vmatprep.subr.bf16.mxu0 %v570
        %602 = vmatpush1.bf16.msra.mxu0 %v569
        %603 = vmatprep.subr.bf16.mxu0 %v572
        %604 = vmatpush1.bf16.msra.mxu0 %v571
        %605 = vmatprep.subr.bf16.mxu0 %v574
        %606 = vmatpush1.bf16.msra.mxu0 %v573
        %607 = vmatprep.subr.bf16.mxu0 0
        %608 = vmatpush1.bf16.msra.mxu0 0
        %609 = vmatprep.subr.bf16.mxu0 0
        %610 = vmatpush1.bf16.msra.mxu0 0
        %611 = vmatprep.subr.bf16.mxu0 0
        %612 = vmatpush1.bf16.msra.mxu0 0
        %613 = vmatprep.subr.bf16.mxu0 0
        %614 = vmatpush1.bf16.msra.mxu0 0
        %615 = vmatprep.subr.bf16.mxu0 0
        %616 = vmatpush1.bf16.msra.mxu0 0
        %617 = vmatprep.subr.bf16.mxu0 0
        %618 = vmatpush1.bf16.msra.mxu0 0
        %619 = vmatprep.subr.bf16.mxu0 0
        %620 = vmatpush1.bf16.msra.mxu0 0
        %621 = vmatprep.subr.bf16.mxu0 0
        %622 = vmatpush1.bf16.msra.mxu0 0
        %623 = vmatprep.mubr.bf16.mxu0 0
        %624 = vmatmul.mubr.bf16.gmra.mrb[0].mxu0 %v479
        %v625 = vpop.f32.mrb[0].mxu0
        %v626 = vadd.f32 %v408, %v625
        %v627 = vpop.f32.mrb[0].mxu0
        %v628 = vadd.f32 %v412, %v627
        %v629 = vpop.f32.mrb[0].mxu0
        %v630 = vadd.f32 %v408, %v629
        %v631 = vpop.f32.mrb[0].mxu0
        %v632 = vadd.f32 %v412, %v631
        %633 = vmatprep.mubr.bf16.mxu0 0
        %634 = vmatmul.mubr.bf16.gmra.mrb[0].mxu0 %v480
        %v635 = vpop.f32.mrb[0].mxu0
        %v636 = vadd.f32 %v408, %v635
        %v637 = vpop.f32.mrb[0].mxu0
        %v638 = vadd.f32 %v412, %v637
        %v639 = vpop.f32.mrb[0].mxu0
        %v640 = vadd.f32 %v408, %v639
        %v641 = vpop.f32.mrb[0].mxu0
        %v642 = vadd.f32 %v412, %v641
        %643 = vmatprep.mubr.bf16.mxu0 0
        %644 = vmatmul.mubr.bf16.gmra.mrb[0].mxu0 %v481
        %v645 = vpop.f32.mrb[0].mxu0
        %v646 = vadd.f32 %v408, %v645
        %v647 = vpop.f32.mrb[0].mxu0
        %v648 = vadd.f32 %v412, %v647
        %v649 = vpop.f32.mrb[0].mxu0
        %v650 = vadd.f32 %v408, %v649
        %v651 = vpop.f32.mrb[0].mxu0
        %v652 = vadd.f32 %v412, %v651
        %653 = vmatprep.mubr.bf16.mxu0 0
        %654 = vmatmul.mubr.bf16.gmra.mrb[0].mxu0 %v482
        %v655 = vpop.f32.mrb[0].mxu0
        %v656 = vadd.f32 %v408, %v655
        %v657 = vpop.f32.mrb[0].mxu0
        %v658 = vadd.f32 %v412, %v657
        %v659 = vpop.f32.mrb[0].mxu0
        %v660 = vadd.f32 %v408, %v659
        %v661 = vpop.f32.mrb[0].mxu0
        %v662 = vadd.f32 %v412, %v661
        %663 = vmatprep.mubr.bf16.mxu0 0
        %664 = vmatmul.mubr.bf16.gmra.mrb[0].mxu0 %v483
        %v665 = vpop.f32.mrb[0].mxu0
        %v666 = vadd.f32 %v408, %v665
        %v667 = vpop.f32.mrb[0].mxu0
        %v668 = vadd.f32 %v412, %v667
        %v669 = vpop.f32.mrb[0].mxu0
        %v670 = vadd.f32 %v408, %v669
        %v671 = vpop.f32.mrb[0].mxu0
        %v672 = vadd.f32 %v412, %v671
        %673 = vmatprep.mubr.bf16.mxu0 0
        %674 = vmatmul.mubr.bf16.gmra.mrb[0].mxu0 %v484
        %v675 = vpop.f32.mrb[0].mxu0
        %v676 = vadd.f32 %v408, %v675
        %v677 = vpop.f32.mrb[0].mxu0
        %v678 = vadd.f32 %v412, %v677
        %v679 = vpop.f32.mrb[0].mxu0
        %v680 = vadd.f32 %v408, %v679
        %v681 = vpop.f32.mrb[0].mxu0
        %v682 = vadd.f32 %v412, %v681
        %683 = vmatprep.mubr.bf16.mxu0 0
        %684 = vmatmul.mubr.bf16.gmra.mrb[0].mxu0 %v485
        %v685 = vpop.f32.mrb[0].mxu0
        %v686 = vadd.f32 %v408, %v685
        %v687 = vpop.f32.mrb[0].mxu0
        %v688 = vadd.f32 %v412, %v687
        %v689 = vpop.f32.mrb[0].mxu0
        %v690 = vadd.f32 %v408, %v689
        %v691 = vpop.f32.mrb[0].mxu0
        %v692 = vadd.f32 %v412, %v691
        %693 = vmatprep.mubr.bf16.mxu0 0
        %694 = vmatmul.mubr.bf16.gmra.mrb[0].mxu0 %v486
        %v695 = vpop.f32.mrb[0].mxu0
        %v696 = vadd.f32 %v408, %v695
        %v697 = vpop.f32.mrb[0].mxu0
        %v698 = vadd.f32 %v412, %v697
        %v699 = vpop.f32.mrb[0].mxu0
        %v700 = vadd.f32 %v408, %v699
        %v701 = vpop.f32.mrb[0].mxu0
        %v702 = vadd.f32 %v412, %v701
        %703 = vmatprep.mubr.bf16.mxu0 0
        %704 = vmatmul.mubr.bf16.gmra.mrb[0].mxu0 %v487
        %v705 = vpop.f32.mrb[0].mxu0
        %v706 = vadd.f32 %v408, %v705
        %v707 = vpop.f32.mrb[0].mxu0
        %v708 = vadd.f32 %v412, %v707
        %v709 = vpop.f32.mrb[0].mxu0
        %v710 = vadd.f32 %v408, %v709
        %v711 = vpop.f32.mrb[0].mxu0
        %v712 = vadd.f32 %v412, %v711
        %713 = vmatprep.mubr.bf16.mxu0 0
        %714 = vmatmul.mubr.bf16.gmra.mrb[0].mxu0 %v488
        %v715 = vpop.f32.mrb[0].mxu0
        %v716 = vadd.f32 %v408, %v715
        %v717 = vpop.f32.mrb[0].mxu0
        %v718 = vadd.f32 %v412, %v717
        %v719 = vpop.f32.mrb[0].mxu0
        %v720 = vadd.f32 %v408, %v719
        %v721 = vpop.f32.mrb[0].mxu0
        %v722 = vadd.f32 %v412, %v721
        %723 = vmatprep.mubr.bf16.mxu0 0
        %724 = vmatmul.mubr.bf16.gmra.mrb[0].mxu0 %v489
        %v725 = vpop.f32.mrb[0].mxu0
        %v726 = vadd.f32 %v408, %v725
        %v727 = vpop.f32.mrb[0].mxu0
        %v728 = vadd.f32 %v412, %v727
        %v729 = vpop.f32.mrb[0].mxu0
        %v730 = vadd.f32 %v408, %v729
        %v731 = vpop.f32.mrb[0].mxu0
        %v732 = vadd.f32 %v412, %v731
        %733 = vmatprep.mubr.bf16.mxu0 0
        %734 = vmatmul.mubr.bf16.gmra.mrb[0].mxu0 %v490
        %v735 = vpop.f32.mrb[0].mxu0
        %v736 = vadd.f32 %v408, %v735
        %v737 = vpop.f32.mrb[0].mxu0
        %v738 = vadd.f32 %v412, %v737
        %v739 = vpop.f32.mrb[0].mxu0
        %v740 = vadd.f32 %v408, %v739
        %v741 = vpop.f32.mrb[0].mxu0
        %v742 = vadd.f32 %v412, %v741
        %743 = vmatprep.mubr.bf16.mxu0 0
        %744 = vmatmul.mubr.bf16.gmra.mrb[0].mxu0 %v491
        %v745 = vpop.f32.mrb[0].mxu0
        %v746 = vadd.f32 %v408, %v745
        %v747 = vpop.f32.mrb[0].mxu0
        %v748 = vadd.f32 %v412, %v747
        %v749 = vpop.f32.mrb[0].mxu0
        %v750 = vadd.f32 %v408, %v749
        %v751 = vpop.f32.mrb[0].mxu0
        %v752 = vadd.f32 %v412, %v751
        %753 = vmatprep.mubr.bf16.mxu0 0
        %754 = vmatmul.mubr.bf16.gmra.mrb[0].mxu0 %v492
        %v755 = vpop.f32.mrb[0].mxu0
        %v756 = vadd.f32 %v408, %v755
        %v757 = vpop.f32.mrb[0].mxu0
        %v758 = vadd.f32 %v412, %v757
        %v759 = vpop.f32.mrb[0].mxu0
        %v760 = vadd.f32 %v408, %v759
        %v761 = vpop.f32.mrb[0].mxu0
        %v762 = vadd.f32 %v412, %v761
        %763 = vmatprep.mubr.bf16.mxu0 0
        %764 = vmatmul.mubr.bf16.gmra.mrb[0].mxu0 %v493
        %v765 = vpop.f32.mrb[0].mxu0
        %v766 = vadd.f32 %v408, %v765
        %v767 = vpop.f32.mrb[0].mxu0
        %v768 = vadd.f32 %v412, %v767
        %v769 = vpop.f32.mrb[0].mxu0
        %v770 = vadd.f32 %v408, %v769
        %v771 = vpop.f32.mrb[0].mxu0
        %v772 = vadd.f32 %v412, %v771
        %773 = vmatprep.mubr.bf16.mxu0 0
        %774 = vmatmul.mubr.bf16.gmra.mrb[0].mxu0 %v494
        %v775 = vpop.f32.mrb[0].mxu0
        %v776 = vadd.f32 %v408, %v775
        %v777 = vpop.f32.mrb[0].mxu0
        %v778 = vadd.f32 %v412, %v777
        %v779 = vpop.f32.mrb[0].mxu0
        %v780 = vadd.f32 %v408, %v779
        %v781 = vpop.f32.mrb[0].mxu0
        %v782 = vadd.f32 %v412, %v781
        %783 = vdwg.mxu0
        %v784 = vmax.f32 %v626, 0.0
        %v785 = vmax.f32 %v628, 0.0
        %v786 = vmax.f32 %v630, 0.0
        %v787 = vmax.f32 %v632, 0.0
        %v788 = vmax.f32 %v636, 0.0
        %v789 = vmax.f32 %v638, 0.0
        %v790 = vmax.f32 %v640, 0.0
        %v791 = vmax.f32 %v642, 0.0
        %v792 = vmax.f32 %v646, 0.0
        %v793 = vmax.f32 %v648, 0.0
        %v794 = vmax.f32 %v650, 0.0
        %v795 = vmax.f32 %v652, 0.0
        %v796 = vmax.f32 %v656, 0.0
        %v797 = vmax.f32 %v658, 0.0
        %v798 = vmax.f32 %v660, 0.0
        %v799 = vmax.f32 %v662, 0.0
        %v800 = vmax.f32 %v666, 0.0
        %v801 = vmax.f32 %v668, 0.0
        %v802 = vmax.f32 %v670, 0.0
        %v803 = vmax.f32 %v672, 0.0
        %v804 = vmax.f32 %v676, 0.0
        %v805 = vmax.f32 %v678, 0.0
        %v806 = vmax.f32 %v680, 0.0
        %v807 = vmax.f32 %v682, 0.0
        %v808 = vmax.f32 %v686, 0.0
        %v809 = vmax.f32 %v688, 0.0
        %v810 = vmax.f32 %v690, 0.0
        %v811 = vmax.f32 %v692, 0.0
        %v812 = vmax.f32 %v696, 0.0
        %v813 = vmax.f32 %v698, 0.0
        %v814 = vmax.f32 %v700, 0.0
        %v815 = vmax.f32 %v702, 0.0
        %v816 = vmax.f32 %v706, 0.0
        %v817 = vmax.f32 %v708, 0.0
        %v818 = vmax.f32 %v710, 0.0
        %v819 = vmax.f32 %v712, 0.0
        %v820 = vmax.f32 %v716, 0.0
        %v821 = vmax.f32 %v718, 0.0
        %v822 = vmax.f32 %v720, 0.0
        %v823 = vmax.f32 %v722, 0.0
        %v824 = vmax.f32 %v726, 0.0
        %v825 = vmax.f32 %v728, 0.0
        %v826 = vmax.f32 %v730, 0.0
        %v827 = vmax.f32 %v732, 0.0
        %v828 = vmax.f32 %v736, 0.0
        %v829 = vmax.f32 %v738, 0.0
        %v830 = vmax.f32 %v740, 0.0
        %v831 = vmax.f32 %v742, 0.0
        %v832 = vmax.f32 %v746, 0.0
        %v833 = vmax.f32 %v748, 0.0
        %v834 = vmax.f32 %v750, 0.0
        %v835 = vmax.f32 %v752, 0.0
        %v836 = vmax.f32 %v756, 0.0
        %v837 = vmax.f32 %v758, 0.0
        %v838 = vmax.f32 %v760, 0.0
        %v839 = vmax.f32 %v762, 0.0
        %v840 = vmax.f32 %v766, 0.0
        %v841 = vmax.f32 %v768, 0.0
        %v842 = vmax.f32 %v770, 0.0
        %v843 = vmax.f32 %v772, 0.0
        %v844 = vmax.f32 %v776, 0.0
        %v845 = vmax.f32 %v778, 0.0
        %v846 = vmax.f32 %v780, 0.0
        %v847 = vmax.f32 %v782, 0.0
        %v848 = vpack.c.bf16 %v786, %v784
        %v849 = vpack.c.bf16 %v787, %v785
        %v850 = vpack.c.bf16 %v790, %v788
        %v851 = vpack.c.bf16 %v791, %v789
        %v852 = vpack.c.bf16 %v794, %v792
        %v853 = vpack.c.bf16 %v795, %v793
        %v854 = vpack.c.bf16 %v798, %v796
        %v855 = vpack.c.bf16 %v799, %v797
        %v856 = vpack.c.bf16 %v802, %v800
        %v857 = vpack.c.bf16 %v803, %v801
        %v858 = vpack.c.bf16 %v806, %v804
        %v859 = vpack.c.bf16 %v807, %v805
        %v860 = vpack.c.bf16 %v810, %v808
        %v861 = vpack.c.bf16 %v811, %v809
        %v862 = vpack.c.bf16 %v814, %v812
        %v863 = vpack.c.bf16 %v815, %v813
        %v864 = vpack.c.bf16 %v818, %v816
        %v865 = vpack.c.bf16 %v819, %v817
        %v866 = vpack.c.bf16 %v822, %v820
        %v867 = vpack.c.bf16 %v823, %v821
        %v868 = vpack.c.bf16 %v826, %v824
        %v869 = vpack.c.bf16 %v827, %v825
        %v870 = vpack.c.bf16 %v830, %v828
        %v871 = vpack.c.bf16 %v831, %v829
        %v872 = vpack.c.bf16 %v834, %v832
        %v873 = vpack.c.bf16 %v835, %v833
        %v874 = vpack.c.bf16 %v838, %v836
        %v875 = vpack.c.bf16 %v839, %v837
        %v876 = vpack.c.bf16 %v842, %v840
        %v877 = vpack.c.bf16 %v843, %v841
        %v878 = vpack.c.bf16 %v846, %v844
        %v879 = vpack.c.bf16 %v847, %v845
        %v880 = vld [vmem:[%s3] sm:$0xff]
        %v881 = vld [vmem:[%s3 + $0x8] sm:$0xff]
        %v882 = vld [vmem:[%s3 + $0x10] sm:$0xff]
        %v883 = vld [vmem:[%s3 + $0x18] sm:$0xff]
        %v884 = vld [vmem:[%s3 + $0x20] sm:$0xff]
        %v885 = vld [vmem:[%s3 + $0x28] sm:$0xff]
        %v886 = vld [vmem:[%s3 + $0x30] sm:$0xff]
        %v887 = vld [vmem:[%s3 + $0x38] sm:$0xff]
        %v888 = vld [vmem:[%s3 + $0x40] sm:$0xff]
        %v889 = vld [vmem:[%s3 + $0x48] sm:$0xff]
        %v890 = vld [vmem:[%s3 + $0x50] sm:$0xff]
        %v891 = vld [vmem:[%s3 + $0x58] sm:$0xff]
        %v892 = vld [vmem:[%s3 + $0x60] sm:$0xff]
        %v893 = vld [vmem:[%s3 + $0x68] sm:$0xff]
        %v894 = vld [vmem:[%s3 + $0x70] sm:$0xff]
        %v895 = vld [vmem:[%s3 + $0x78] sm:$0xff]
        %v896 = vld [vmem:[%s3 + $0x80] sm:$0xff]
        %v897 = vld [vmem:[%s3 + $0x88] sm:$0xff]
        %v898 = vld [vmem:[%s3 + $0x90] sm:$0xff]
        %v899 = vld [vmem:[%s3 + $0x98] sm:$0xff]
        %v900 = vld [vmem:[%s3 + $0xa0] sm:$0xff]
        %v901 = vld [vmem:[%s3 + $0xa8] sm:$0xff]
        %v902 = vld [vmem:[%s3 + $0xb0] sm:$0xff]
        %v903 = vld [vmem:[%s3 + $0xb8] sm:$0xff]
        %v904 = vld [vmem:[%s3 + $0xc0] sm:$0xff]
        %v905 = vld [vmem:[%s3 + $0xc8] sm:$0xff]
        %v906 = vld [vmem:[%s3 + $0xd0] sm:$0xff]
        %v907 = vld [vmem:[%s3 + $0xd8] sm:$0xff]
        %v908 = vld [vmem:[%s3 + $0xe0] sm:$0xff]
        %v909 = vld [vmem:[%s3 + $0xe8] sm:$0xff]
        %v910 = vld [vmem:[%s3 + $0xf0] sm:$0xff]
        %v911 = vld [vmem:[%s3 + $0xf8] sm:$0xff]
        %v912 = vld [vmem:[%s4] sm:$0x3]
        %v914 = vlaneseq
        %v915 = vshrl.u32 %v914, 7
        %v916 = vsub.s32 0, %v915
        %v917 = vrot.slane %v912, %v916
        %v918 = vlaneseq
        %v919 = vshrl.u32 %v918, 7
        %v920 = vsub.s32 1, %v919
        %v921 = vrot.slane %v912, %v920
        %v956 = vunpack.c.l.b16 %v880
        %v957 = vunpack.c.h.b16 %v880
        %v958 = vunpack.c.l.b16 %v881
        %v959 = vunpack.c.h.b16 %v881
        %v960 = vunpack.c.l.b16 %v882
        %v961 = vunpack.c.h.b16 %v882
        %v962 = vunpack.c.l.b16 %v883
        %v963 = vunpack.c.h.b16 %v883
        %v964 = vunpack.c.l.b16 %v884
        %v965 = vunpack.c.h.b16 %v884
        %v966 = vunpack.c.l.b16 %v885
        %v967 = vunpack.c.h.b16 %v885
        %v968 = vunpack.c.l.b16 %v886
        %v969 = vunpack.c.h.b16 %v886
        %v970 = vunpack.c.l.b16 %v887
        %v971 = vunpack.c.h.b16 %v887
        %v972 = vunpack.c.l.b16 %v888
        %v973 = vunpack.c.h.b16 %v888
        %v974 = vunpack.c.l.b16 %v889
        %v975 = vunpack.c.h.b16 %v889
        %v976 = vunpack.c.l.b16 %v890
        %v977 = vunpack.c.h.b16 %v890
        %v978 = vunpack.c.l.b16 %v891
        %v979 = vunpack.c.h.b16 %v891
        %v980 = vunpack.c.l.b16 %v892
        %v981 = vunpack.c.h.b16 %v892
        %v982 = vunpack.c.l.b16 %v893
        %v983 = vunpack.c.h.b16 %v893
        %v984 = vunpack.c.l.b16 %v894
        %v985 = vunpack.c.h.b16 %v894
        %v986 = vunpack.c.l.b16 %v895
        %v987 = vunpack.c.h.b16 %v895
        %v988 = vunpack.c.l.b16 %v896
        %v989 = vunpack.c.h.b16 %v896
        %v990 = vunpack.c.l.b16 %v897
        %v991 = vunpack.c.h.b16 %v897
        %v992 = vunpack.c.l.b16 %v898
        %v993 = vunpack.c.h.b16 %v898
        %v994 = vunpack.c.l.b16 %v899
        %v995 = vunpack.c.h.b16 %v899
        %v996 = vunpack.c.l.b16 %v900
        %v997 = vunpack.c.h.b16 %v900
        %v998 = vunpack.c.l.b16 %v901
        %v999 = vunpack.c.h.b16 %v901
        %v1000 = vunpack.c.l.b16 %v902
        %v1001 = vunpack.c.h.b16 %v902
        %v1002 = vunpack.c.l.b16 %v903
        %v1003 = vunpack.c.h.b16 %v903
        %v1004 = vunpack.c.l.b16 %v904
        %v1005 = vunpack.c.h.b16 %v904
        %v1006 = vunpack.c.l.b16 %v905
        %v1007 = vunpack.c.h.b16 %v905
        %v1008 = vunpack.c.l.b16 %v906
        %v1009 = vunpack.c.h.b16 %v906
        %v1010 = vunpack.c.l.b16 %v907
        %v1011 = vunpack.c.h.b16 %v907
        %v1012 = vunpack.c.l.b16 %v908
        %v1013 = vunpack.c.h.b16 %v908
        %v1014 = vunpack.c.l.b16 %v909
        %v1015 = vunpack.c.h.b16 %v909
        %v1016 = vunpack.c.l.b16 %v910
        %v1017 = vunpack.c.h.b16 %v910
        %v1018 = vunpack.c.l.b16 %v911
        %v1019 = vunpack.c.h.b16 %v911
        %v1020 = vpack.c.b16 %v958, %v956
        %v1021 = vpack.c.b16 %v959, %v957
        %v1022 = vpack.c.b16 %v962, %v960
        %v1023 = vpack.c.b16 %v963, %v961
        %v1024 = vpack.c.b16 %v966, %v964
        %v1025 = vpack.c.b16 %v967, %v965
        %v1026 = vpack.c.b16 %v970, %v968
        %v1027 = vpack.c.b16 %v971, %v969
        %v1028 = vpack.c.b16 %v974, %v972
        %v1029 = vpack.c.b16 %v975, %v973
        %v1030 = vpack.c.b16 %v978, %v976
        %v1031 = vpack.c.b16 %v979, %v977
        %v1032 = vpack.c.b16 %v982, %v980
        %v1033 = vpack.c.b16 %v983, %v981
        %v1034 = vpack.c.b16 %v986, %v984
        %v1035 = vpack.c.b16 %v987, %v985
        %v1036 = vpack.c.b16 %v990, %v988
        %v1037 = vpack.c.b16 %v991, %v989
        %v1038 = vpack.c.b16 %v994, %v992
        %v1039 = vpack.c.b16 %v995, %v993
        %v1040 = vpack.c.b16 %v998, %v996
        %v1041 = vpack.c.b16 %v999, %v997
        %v1042 = vpack.c.b16 %v1002, %v1000
        %v1043 = vpack.c.b16 %v1003, %v1001
        %v1044 = vpack.c.b16 %v1006, %v1004
        %v1045 = vpack.c.b16 %v1007, %v1005
        %v1046 = vpack.c.b16 %v1010, %v1008
        %v1047 = vpack.c.b16 %v1011, %v1009
        %v1048 = vpack.c.b16 %v1014, %v1012
        %v1049 = vpack.c.b16 %v1015, %v1013
        %v1050 = vpack.c.b16 %v1018, %v1016
        %v1051 = vpack.c.b16 %v1019, %v1017
        %1084 = vmatprep.subr.bf16.mxu0 %v1021
        %1085 = vmatpush1.bf16.msra.mxu0 %v1020
        %1086 = vmatprep.subr.bf16.mxu0 %v1023
        %1087 = vmatpush1.bf16.msra.mxu0 %v1022
        %1088 = vmatprep.subr.bf16.mxu0 %v1025
        %1089 = vmatpush1.bf16.msra.mxu0 %v1024
        %1090 = vmatprep.subr.bf16.mxu0 %v1027
        %1091 = vmatpush1.bf16.msra.mxu0 %v1026
        %1092 = vmatprep.subr.bf16.mxu0 %v1029
        %1093 = vmatpush1.bf16.msra.mxu0 %v1028
        %1094 = vmatprep.subr.bf16.mxu0 %v1031
        %1095 = vmatpush1.bf16.msra.mxu0 %v1030
        %1096 = vmatprep.subr.bf16.mxu0 %v1033
        %1097 = vmatpush1.bf16.msra.mxu0 %v1032
        %1098 = vmatprep.subr.bf16.mxu0 %v1035
        %1099 = vmatpush1.bf16.msra.mxu0 %v1034
        %1100 = vmatprep.subr.bf16.mxu0 %v1037
        %1101 = vmatpush1.bf16.msra.mxu0 %v1036
        %1102 = vmatprep.subr.bf16.mxu0 %v1039
        %1103 = vmatpush1.bf16.msra.mxu0 %v1038
        %1104 = vmatprep.subr.bf16.mxu0 %v1041
        %1105 = vmatpush1.bf16.msra.mxu0 %v1040
        %1106 = vmatprep.subr.bf16.mxu0 %v1043
        %1107 = vmatpush1.bf16.msra.mxu0 %v1042
        %1108 = vmatprep.subr.bf16.mxu0 %v1045
        %1109 = vmatpush1.bf16.msra.mxu0 %v1044
        %1110 = vmatprep.subr.bf16.mxu0 %v1047
        %1111 = vmatpush1.bf16.msra.mxu0 %v1046
        %1112 = vmatprep.subr.bf16.mxu0 %v1049
        %1113 = vmatpush1.bf16.msra.mxu0 %v1048
        %1114 = vmatprep.subr.bf16.mxu0 %v1051
        %1115 = vmatpush1.bf16.msra.mxu0 %v1050
        %1116 = vmatprep.mubr.bf16.mxu0 %v849
        %1117 = vmatmul.mubr.bf16.gmra.mrb[0].mxu0 %v848
        %v1118 = vpop.f32.mrb[0].mxu0
        %v1119 = vadd.f32 %v917, %v1118
        %v1120 = vpop.f32.mrb[0].mxu0
        %v1121 = vadd.f32 %v921, %v1120
        %v1122 = vpop.f32.mrb[0].mxu0
        %v1123 = vadd.f32 %v917, %v1122
        %v1124 = vpop.f32.mrb[0].mxu0
        %v1125 = vadd.f32 %v921, %v1124
        %1126 = vmatprep.mubr.bf16.mxu0 %v851
        %1127 = vmatmul.mubr.bf16.gmra.mrb[0].mxu0 %v850
        %v1128 = vpop.f32.mrb[0].mxu0
        %v1129 = vadd.f32 %v917, %v1128
        %v1130 = vpop.f32.mrb[0].mxu0
        %v1131 = vadd.f32 %v921, %v1130
        %v1132 = vpop.f32.mrb[0].mxu0
        %v1133 = vadd.f32 %v917, %v1132
        %v1134 = vpop.f32.mrb[0].mxu0
        %v1135 = vadd.f32 %v921, %v1134
        %1136 = vmatprep.mubr.bf16.mxu0 %v853
        %1137 = vmatmul.mubr.bf16.gmra.mrb[0].mxu0 %v852
        %v1138 = vpop.f32.mrb[0].mxu0
        %v1139 = vadd.f32 %v917, %v1138
        %v1140 = vpop.f32.mrb[0].mxu0
        %v1141 = vadd.f32 %v921, %v1140
        %v1142 = vpop.f32.mrb[0].mxu0
        %v1143 = vadd.f32 %v917, %v1142
        %v1144 = vpop.f32.mrb[0].mxu0
        %v1145 = vadd.f32 %v921, %v1144
        %1146 = vmatprep.mubr.bf16.mxu0 %v855
        %1147 = vmatmul.mubr.bf16.gmra.mrb[0].mxu0 %v854
        %v1148 = vpop.f32.mrb[0].mxu0
        %v1149 = vadd.f32 %v917, %v1148
        %v1150 = vpop.f32.mrb[0].mxu0
        %v1151 = vadd.f32 %v921, %v1150
        %v1152 = vpop.f32.mrb[0].mxu0
        %v1153 = vadd.f32 %v917, %v1152
        %v1154 = vpop.f32.mrb[0].mxu0
        %v1155 = vadd.f32 %v921, %v1154
        %1156 = vmatprep.mubr.bf16.mxu0 %v857
        %1157 = vmatmul.mubr.bf16.gmra.mrb[0].mxu0 %v856
        %v1158 = vpop.f32.mrb[0].mxu0
        %v1159 = vadd.f32 %v917, %v1158
        %v1160 = vpop.f32.mrb[0].mxu0
        %v1161 = vadd.f32 %v921, %v1160
        %v1162 = vpop.f32.mrb[0].mxu0
        %v1163 = vadd.f32 %v917, %v1162
        %v1164 = vpop.f32.mrb[0].mxu0
        %v1165 = vadd.f32 %v921, %v1164
        %1166 = vmatprep.mubr.bf16.mxu0 %v859
        %1167 = vmatmul.mubr.bf16.gmra.mrb[0].mxu0 %v858
        %v1168 = vpop.f32.mrb[0].mxu0
        %v1169 = vadd.f32 %v917, %v1168
        %v1170 = vpop.f32.mrb[0].mxu0
        %v1171 = vadd.f32 %v921, %v1170
        %v1172 = vpop.f32.mrb[0].mxu0
        %v1173 = vadd.f32 %v917, %v1172
        %v1174 = vpop.f32.mrb[0].mxu0
        %v1175 = vadd.f32 %v921, %v1174
        %1176 = vmatprep.mubr.bf16.mxu0 %v861
        %1177 = vmatmul.mubr.bf16.gmra.mrb[0].mxu0 %v860
        %v1178 = vpop.f32.mrb[0].mxu0
        %v1179 = vadd.f32 %v917, %v1178
        %v1180 = vpop.f32.mrb[0].mxu0
        %v1181 = vadd.f32 %v921, %v1180
        %v1182 = vpop.f32.mrb[0].mxu0
        %v1183 = vadd.f32 %v917, %v1182
        %v1184 = vpop.f32.mrb[0].mxu0
        %v1185 = vadd.f32 %v921, %v1184
        %1186 = vmatprep.mubr.bf16.mxu0 %v863
        %1187 = vmatmul.mubr.bf16.gmra.mrb[0].mxu0 %v862
        %v1188 = vpop.f32.mrb[0].mxu0
        %v1189 = vadd.f32 %v917, %v1188
        %v1190 = vpop.f32.mrb[0].mxu0
        %v1191 = vadd.f32 %v921, %v1190
        %v1192 = vpop.f32.mrb[0].mxu0
        %v1193 = vadd.f32 %v917, %v1192
        %v1194 = vpop.f32.mrb[0].mxu0
        %v1195 = vadd.f32 %v921, %v1194
        %1196 = vmatprep.mubr.bf16.mxu0 %v865
        %1197 = vmatmul.mubr.bf16.gmra.mrb[0].mxu0 %v864
        %v1198 = vpop.f32.mrb[0].mxu0
        %v1199 = vadd.f32 %v917, %v1198
        %v1200 = vpop.f32.mrb[0].mxu0
        %v1201 = vadd.f32 %v921, %v1200
        %v1202 = vpop.f32.mrb[0].mxu0
        %v1203 = vadd.f32 %v917, %v1202
        %v1204 = vpop.f32.mrb[0].mxu0
        %v1205 = vadd.f32 %v921, %v1204
        %1206 = vmatprep.mubr.bf16.mxu0 %v867
        %1207 = vmatmul.mubr.bf16.gmra.mrb[0].mxu0 %v866
        %v1208 = vpop.f32.mrb[0].mxu0
        %v1209 = vadd.f32 %v917, %v1208
        %v1210 = vpop.f32.mrb[0].mxu0
        %v1211 = vadd.f32 %v921, %v1210
        %v1212 = vpop.f32.mrb[0].mxu0
        %v1213 = vadd.f32 %v917, %v1212
        %v1214 = vpop.f32.mrb[0].mxu0
        %v1215 = vadd.f32 %v921, %v1214
        %1216 = vmatprep.mubr.bf16.mxu0 %v869
        %1217 = vmatmul.mubr.bf16.gmra.mrb[0].mxu0 %v868
        %v1218 = vpop.f32.mrb[0].mxu0
        %v1219 = vadd.f32 %v917, %v1218
        %v1220 = vpop.f32.mrb[0].mxu0
        %v1221 = vadd.f32 %v921, %v1220
        %v1222 = vpop.f32.mrb[0].mxu0
        %v1223 = vadd.f32 %v917, %v1222
        %v1224 = vpop.f32.mrb[0].mxu0
        %v1225 = vadd.f32 %v921, %v1224
        %1226 = vmatprep.mubr.bf16.mxu0 %v871
        %1227 = vmatmul.mubr.bf16.gmra.mrb[0].mxu0 %v870
        %v1228 = vpop.f32.mrb[0].mxu0
        %v1229 = vadd.f32 %v917, %v1228
        %v1230 = vpop.f32.mrb[0].mxu0
        %v1231 = vadd.f32 %v921, %v1230
        %v1232 = vpop.f32.mrb[0].mxu0
        %v1233 = vadd.f32 %v917, %v1232
        %v1234 = vpop.f32.mrb[0].mxu0
        %v1235 = vadd.f32 %v921, %v1234
        %1236 = vmatprep.mubr.bf16.mxu0 %v873
        %1237 = vmatmul.mubr.bf16.gmra.mrb[0].mxu0 %v872
        %v1238 = vpop.f32.mrb[0].mxu0
        %v1239 = vadd.f32 %v917, %v1238
        %v1240 = vpop.f32.mrb[0].mxu0
        %v1241 = vadd.f32 %v921, %v1240
        %v1242 = vpop.f32.mrb[0].mxu0
        %v1243 = vadd.f32 %v917, %v1242
        %v1244 = vpop.f32.mrb[0].mxu0
        %v1245 = vadd.f32 %v921, %v1244
        %1246 = vmatprep.mubr.bf16.mxu0 %v875
        %1247 = vmatmul.mubr.bf16.gmra.mrb[0].mxu0 %v874
        %v1248 = vpop.f32.mrb[0].mxu0
        %v1249 = vadd.f32 %v917, %v1248
        %v1250 = vpop.f32.mrb[0].mxu0
        %v1251 = vadd.f32 %v921, %v1250
        %v1252 = vpop.f32.mrb[0].mxu0
        %v1253 = vadd.f32 %v917, %v1252
        %v1254 = vpop.f32.mrb[0].mxu0
        %v1255 = vadd.f32 %v921, %v1254
        %1256 = vmatprep.mubr.bf16.mxu0 %v877
        %1257 = vmatmul.mubr.bf16.gmra.mrb[0].mxu0 %v876
        %v1258 = vpop.f32.mrb[0].mxu0
        %v1259 = vadd.f32 %v917, %v1258
        %v1260 = vpop.f32.mrb[0].mxu0
        %v1261 = vadd.f32 %v921, %v1260
        %v1262 = vpop.f32.mrb[0].mxu0
        %v1263 = vadd.f32 %v917, %v1262
        %v1264 = vpop.f32.mrb[0].mxu0
        %v1265 = vadd.f32 %v921, %v1264
        %1266 = vmatprep.mubr.bf16.mxu0 %v879
        %1267 = vmatmul.mubr.bf16.gmra.mrb[0].mxu0 %v878
        %v1268 = vpop.f32.mrb[0].mxu0
        %v1269 = vadd.f32 %v917, %v1268
        %v1270 = vpop.f32.mrb[0].mxu0
        %v1271 = vadd.f32 %v921, %v1270
        %v1272 = vpop.f32.mrb[0].mxu0
        %v1273 = vadd.f32 %v917, %v1272
        %v1274 = vpop.f32.mrb[0].mxu0
        %v1275 = vadd.f32 %v921, %v1274
        %1276 = vdwg.mxu0
        %v1277 = vmax.f32 %v1119, 0.0
        %v1278 = vmax.f32 %v1121, 0.0
        %v1279 = vmax.f32 %v1123, 0.0
        %v1280 = vmax.f32 %v1125, 0.0
        %v1281 = vmax.f32 %v1129, 0.0
        %v1282 = vmax.f32 %v1131, 0.0
        %v1283 = vmax.f32 %v1133, 0.0
        %v1284 = vmax.f32 %v1135, 0.0
        %v1285 = vmax.f32 %v1139, 0.0
        %v1286 = vmax.f32 %v1141, 0.0
        %v1287 = vmax.f32 %v1143, 0.0
        %v1288 = vmax.f32 %v1145, 0.0
        %v1289 = vmax.f32 %v1149, 0.0
        %v1290 = vmax.f32 %v1151, 0.0
        %v1291 = vmax.f32 %v1153, 0.0
        %v1292 = vmax.f32 %v1155, 0.0
        %v1293 = vmax.f32 %v1159, 0.0
        %v1294 = vmax.f32 %v1161, 0.0
        %v1295 = vmax.f32 %v1163, 0.0
        %v1296 = vmax.f32 %v1165, 0.0
        %v1297 = vmax.f32 %v1169, 0.0
        %v1298 = vmax.f32 %v1171, 0.0
        %v1299 = vmax.f32 %v1173, 0.0
        %v1300 = vmax.f32 %v1175, 0.0
        %v1301 = vmax.f32 %v1179, 0.0
        %v1302 = vmax.f32 %v1181, 0.0
        %v1303 = vmax.f32 %v1183, 0.0
        %v1304 = vmax.f32 %v1185, 0.0
        %v1305 = vmax.f32 %v1189, 0.0
        %v1306 = vmax.f32 %v1191, 0.0
        %v1307 = vmax.f32 %v1193, 0.0
        %v1308 = vmax.f32 %v1195, 0.0
        %v1309 = vmax.f32 %v1199, 0.0
        %v1310 = vmax.f32 %v1201, 0.0
        %v1311 = vmax.f32 %v1203, 0.0
        %v1312 = vmax.f32 %v1205, 0.0
        %v1313 = vmax.f32 %v1209, 0.0
        %v1314 = vmax.f32 %v1211, 0.0
        %v1315 = vmax.f32 %v1213, 0.0
        %v1316 = vmax.f32 %v1215, 0.0
        %v1317 = vmax.f32 %v1219, 0.0
        %v1318 = vmax.f32 %v1221, 0.0
        %v1319 = vmax.f32 %v1223, 0.0
        %v1320 = vmax.f32 %v1225, 0.0
        %v1321 = vmax.f32 %v1229, 0.0
        %v1322 = vmax.f32 %v1231, 0.0
        %v1323 = vmax.f32 %v1233, 0.0
        %v1324 = vmax.f32 %v1235, 0.0
        %v1325 = vmax.f32 %v1239, 0.0
        %v1326 = vmax.f32 %v1241, 0.0
        %v1327 = vmax.f32 %v1243, 0.0
        %v1328 = vmax.f32 %v1245, 0.0
        %v1329 = vmax.f32 %v1249, 0.0
        %v1330 = vmax.f32 %v1251, 0.0
        %v1331 = vmax.f32 %v1253, 0.0
        %v1332 = vmax.f32 %v1255, 0.0
        %v1333 = vmax.f32 %v1259, 0.0
        %v1334 = vmax.f32 %v1261, 0.0
        %v1335 = vmax.f32 %v1263, 0.0
        %v1336 = vmax.f32 %v1265, 0.0
        %v1337 = vmax.f32 %v1269, 0.0
        %v1338 = vmax.f32 %v1271, 0.0
        %v1339 = vmax.f32 %v1273, 0.0
        %v1340 = vmax.f32 %v1275, 0.0
        %v1341 = vpack.c.bf16 %v1279, %v1277
        %v1342 = vpack.c.bf16 %v1280, %v1278
        %v1343 = vpack.c.bf16 %v1283, %v1281
        %v1344 = vpack.c.bf16 %v1284, %v1282
        %v1345 = vpack.c.bf16 %v1287, %v1285
        %v1346 = vpack.c.bf16 %v1288, %v1286
        %v1347 = vpack.c.bf16 %v1291, %v1289
        %v1348 = vpack.c.bf16 %v1292, %v1290
        %v1349 = vpack.c.bf16 %v1295, %v1293
        %v1350 = vpack.c.bf16 %v1296, %v1294
        %v1351 = vpack.c.bf16 %v1299, %v1297
        %v1352 = vpack.c.bf16 %v1300, %v1298
        %v1353 = vpack.c.bf16 %v1303, %v1301
        %v1354 = vpack.c.bf16 %v1304, %v1302
        %v1355 = vpack.c.bf16 %v1307, %v1305
        %v1356 = vpack.c.bf16 %v1308, %v1306
        %v1357 = vpack.c.bf16 %v1311, %v1309
        %v1358 = vpack.c.bf16 %v1312, %v1310
        %v1359 = vpack.c.bf16 %v1315, %v1313
        %v1360 = vpack.c.bf16 %v1316, %v1314
        %v1361 = vpack.c.bf16 %v1319, %v1317
        %v1362 = vpack.c.bf16 %v1320, %v1318
        %v1363 = vpack.c.bf16 %v1323, %v1321
        %v1364 = vpack.c.bf16 %v1324, %v1322
        %v1365 = vpack.c.bf16 %v1327, %v1325
        %v1366 = vpack.c.bf16 %v1328, %v1326
        %v1367 = vpack.c.bf16 %v1331, %v1329
        %v1368 = vpack.c.bf16 %v1332, %v1330
        %v1369 = vpack.c.bf16 %v1335, %v1333
        %v1370 = vpack.c.bf16 %v1336, %v1334
        %v1371 = vpack.c.bf16 %v1339, %v1337
        %v1372 = vpack.c.bf16 %v1340, %v1338
        %v1373 = vld [vmem:[%s5] sm:$0xf]
        %v1374 = vld [vmem:[%s5 + $0x4] sm:$0xf]
        %v1375 = vld [vmem:[%s5 + $0x8] sm:$0xf]
        %v1376 = vld [vmem:[%s5 + $0xc] sm:$0xf]
        %v1377 = vld [vmem:[%s5 + $0x10] sm:$0xf]
        %v1378 = vld [vmem:[%s5 + $0x14] sm:$0xf]
        %v1379 = vld [vmem:[%s5 + $0x18] sm:$0xf]
        %v1380 = vld [vmem:[%s5 + $0x1c] sm:$0xf]
        %v1381 = vld [vmem:[%s5 + $0x20] sm:$0xf]
        %v1382 = vld [vmem:[%s5 + $0x24] sm:$0xf]
        %v1383 = vld [vmem:[%s5 + $0x28] sm:$0xf]
        %v1384 = vld [vmem:[%s5 + $0x2c] sm:$0xf]
        %v1385 = vld [vmem:[%s5 + $0x30] sm:$0xf]
        %v1386 = vld [vmem:[%s5 + $0x34] sm:$0xf]
        %v1387 = vld [vmem:[%s5 + $0x38] sm:$0xf]
        %v1388 = vld [vmem:[%s5 + $0x3c] sm:$0xf]
        %v1389 = vld [vmem:[%s5 + $0x40] sm:$0xf]
        %v1390 = vld [vmem:[%s5 + $0x44] sm:$0xf]
        %v1391 = vld [vmem:[%s5 + $0x48] sm:$0xf]
        %v1392 = vld [vmem:[%s5 + $0x4c] sm:$0xf]
        %v1393 = vld [vmem:[%s5 + $0x50] sm:$0xf]
        %v1394 = vld [vmem:[%s5 + $0x54] sm:$0xf]
        %v1395 = vld [vmem:[%s5 + $0x58] sm:$0xf]
        %v1396 = vld [vmem:[%s5 + $0x5c] sm:$0xf]
        %v1397 = vld [vmem:[%s5 + $0x60] sm:$0xf]
        %v1398 = vld [vmem:[%s5 + $0x64] sm:$0xf]
        %v1399 = vld [vmem:[%s5 + $0x68] sm:$0xf]
        %v1400 = vld [vmem:[%s5 + $0x6c] sm:$0xf]
        %v1401 = vld [vmem:[%s5 + $0x70] sm:$0xf]
        %v1402 = vld [vmem:[%s5 + $0x74] sm:$0xf]
        %v1403 = vld [vmem:[%s5 + $0x78] sm:$0xf]
        %v1404 = vld [vmem:[%s5 + $0x7c] sm:$0xf]
        %v1405 = vld [vmem:[%s6] sm:$0x1]
        %v1407 = vlaneseq
        %v1408 = vshrl.u32 %v1407, 7
        %v1409 = vsub.s32 0, %v1408
        %v1410 = vrot.slane %v1405, %v1409
        %v1444 = vunpack.c.l.b16 %v1373
        %v1445 = vunpack.c.l.b16 %v1374
        %v1446 = vunpack.c.l.b16 %v1375
        %v1447 = vunpack.c.l.b16 %v1376
        %v1448 = vunpack.c.l.b16 %v1377
        %v1449 = vunpack.c.l.b16 %v1378
        %v1450 = vunpack.c.l.b16 %v1379
        %v1451 = vunpack.c.l.b16 %v1380
        %v1452 = vunpack.c.l.b16 %v1381
        %v1453 = vunpack.c.l.b16 %v1382
        %v1454 = vunpack.c.l.b16 %v1383
        %v1455 = vunpack.c.l.b16 %v1384
        %v1456 = vunpack.c.l.b16 %v1385
        %v1457 = vunpack.c.l.b16 %v1386
        %v1458 = vunpack.c.l.b16 %v1387
        %v1459 = vunpack.c.l.b16 %v1388
        %v1460 = vunpack.c.l.b16 %v1389
        %v1461 = vunpack.c.l.b16 %v1390
        %v1462 = vunpack.c.l.b16 %v1391
        %v1463 = vunpack.c.l.b16 %v1392
        %v1464 = vunpack.c.l.b16 %v1393
        %v1465 = vunpack.c.l.b16 %v1394
        %v1466 = vunpack.c.l.b16 %v1395
        %v1467 = vunpack.c.l.b16 %v1396
        %v1468 = vunpack.c.l.b16 %v1397
        %v1469 = vunpack.c.l.b16 %v1398
        %v1470 = vunpack.c.l.b16 %v1399
        %v1471 = vunpack.c.l.b16 %v1400
        %v1472 = vunpack.c.l.b16 %v1401
        %v1473 = vunpack.c.l.b16 %v1402
        %v1474 = vunpack.c.l.b16 %v1403
        %v1475 = vunpack.c.l.b16 %v1404
        %v1476 = vpack.c.b16 %v1445, %v1444
        %v1477 = vpack.c.b16 %v1447, %v1446
        %v1478 = vpack.c.b16 %v1449, %v1448
        %v1479 = vpack.c.b16 %v1451, %v1450
        %v1480 = vpack.c.b16 %v1453, %v1452
        %v1481 = vpack.c.b16 %v1455, %v1454
        %v1482 = vpack.c.b16 %v1457, %v1456
        %v1483 = vpack.c.b16 %v1459, %v1458
        %v1484 = vpack.c.b16 %v1461, %v1460
        %v1485 = vpack.c.b16 %v1463, %v1462
        %v1486 = vpack.c.b16 %v1465, %v1464
        %v1487 = vpack.c.b16 %v1467, %v1466
        %v1488 = vpack.c.b16 %v1469, %v1468
        %v1489 = vpack.c.b16 %v1471, %v1470
        %v1490 = vpack.c.b16 %v1473, %v1472
        %v1491 = vpack.c.b16 %v1475, %v1474
        %1508 = vmatprep.subr.bf16.mxu0 0
        %1509 = vmatpush1.bf16.msra.mxu0 %v1476
        %1510 = vmatprep.subr.bf16.mxu0 0
        %1511 = vmatpush1.bf16.msra.mxu0 %v1477
        %1512 = vmatprep.subr.bf16.mxu0 0
        %1513 = vmatpush1.bf16.msra.mxu0 %v1478
        %1514 = vmatprep.subr.bf16.mxu0 0
        %1515 = vmatpush1.bf16.msra.mxu0 %v1479
        %1516 = vmatprep.subr.bf16.mxu0 0
        %1517 = vmatpush1.bf16.msra.mxu0 %v1480
        %1518 = vmatprep.subr.bf16.mxu0 0
        %1519 = vmatpush1.bf16.msra.mxu0 %v1481
        %1520 = vmatprep.subr.bf16.mxu0 0
        %1521 = vmatpush1.bf16.msra.mxu0 %v1482
        %1522 = vmatprep.subr.bf16.mxu0 0
        %1523 = vmatpush1.bf16.msra.mxu0 %v1483
        %1524 = vmatprep.subr.bf16.mxu0 0
        %1525 = vmatpush1.bf16.msra.mxu0 %v1484
        %1526 = vmatprep.subr.bf16.mxu0 0
        %1527 = vmatpush1.bf16.msra.mxu0 %v1485
        %1528 = vmatprep.subr.bf16.mxu0 0
        %1529 = vmatpush1.bf16.msra.mxu0 %v1486
        %1530 = vmatprep.subr.bf16.mxu0 0
        %1531 = vmatpush1.bf16.msra.mxu0 %v1487
        %1532 = vmatprep.subr.bf16.mxu0 0
        %1533 = vmatpush1.bf16.msra.mxu0 %v1488
        %1534 = vmatprep.subr.bf16.mxu0 0
        %1535 = vmatpush1.bf16.msra.mxu0 %v1489
        %1536 = vmatprep.subr.bf16.mxu0 0
        %1537 = vmatpush1.bf16.msra.mxu0 %v1490
        %1538 = vmatprep.subr.bf16.mxu0 0
        %1539 = vmatpush1.bf16.msra.mxu0 %v1491
        %1540 = vmatprep.mubr.bf16.mxu0 %v1342
        %1541 = vmatmul.mubr.bf16.gmra.mrb[0].mxu0 %v1341
        %v1542 = vpop.f32.mrb[0].mxu0
        %v1543 = vadd.f32 %v1410, %v1542
        %v1544 = vpop.f32.mrb[0].mxu0
        %v1545 = vpop.f32.mrb[0].mxu0
        %v1546 = vadd.f32 %v1410, %v1545
        %v1547 = vpop.f32.mrb[0].mxu0
        %1548 = vmatprep.mubr.bf16.mxu0 %v1344
        %1549 = vmatmul.mubr.bf16.gmra.mrb[0].mxu0 %v1343
        %v1550 = vpop.f32.mrb[0].mxu0
        %v1551 = vadd.f32 %v1410, %v1550
        %v1552 = vpop.f32.mrb[0].mxu0
        %v1553 = vpop.f32.mrb[0].mxu0
        %v1554 = vadd.f32 %v1410, %v1553
        %v1555 = vpop.f32.mrb[0].mxu0
        %1556 = vmatprep.mubr.bf16.mxu0 %v1346
        %1557 = vmatmul.mubr.bf16.gmra.mrb[0].mxu0 %v1345
        %v1558 = vpop.f32.mrb[0].mxu0
        %v1559 = vadd.f32 %v1410, %v1558
        %v1560 = vpop.f32.mrb[0].mxu0
        %v1561 = vpop.f32.mrb[0].mxu0
        %v1562 = vadd.f32 %v1410, %v1561
        %v1563 = vpop.f32.mrb[0].mxu0
        %1564 = vmatprep.mubr.bf16.mxu0 %v1348
        %1565 = vmatmul.mubr.bf16.gmra.mrb[0].mxu0 %v1347
        %v1566 = vpop.f32.mrb[0].mxu0
        %v1567 = vadd.f32 %v1410, %v1566
        %v1568 = vpop.f32.mrb[0].mxu0
        %v1569 = vpop.f32.mrb[0].mxu0
        %v1570 = vadd.f32 %v1410, %v1569
        %v1571 = vpop.f32.mrb[0].mxu0
        %1572 = vmatprep.mubr.bf16.mxu0 %v1350
        %1573 = vmatmul.mubr.bf16.gmra.mrb[0].mxu0 %v1349
        %v1574 = vpop.f32.mrb[0].mxu0
        %v1575 = vadd.f32 %v1410, %v1574
        %v1576 = vpop.f32.mrb[0].mxu0
        %v1577 = vpop.f32.mrb[0].mxu0
        %v1578 = vadd.f32 %v1410, %v1577
        %v1579 = vpop.f32.mrb[0].mxu0
        %1580 = vmatprep.mubr.bf16.mxu0 %v1352
        %1581 = vmatmul.mubr.bf16.gmra.mrb[0].mxu0 %v1351
        %v1582 = vpop.f32.mrb[0].mxu0
        %v1583 = vadd.f32 %v1410, %v1582
        %v1584 = vpop.f32.mrb[0].mxu0
        %v1585 = vpop.f32.mrb[0].mxu0
        %v1586 = vadd.f32 %v1410, %v1585
        %v1587 = vpop.f32.mrb[0].mxu0
        %1588 = vmatprep.mubr.bf16.mxu0 %v1354
        %1589 = vmatmul.mubr.bf16.gmra.mrb[0].mxu0 %v1353
        %v1590 = vpop.f32.mrb[0].mxu0
        %v1591 = vadd.f32 %v1410, %v1590
        %v1592 = vpop.f32.mrb[0].mxu0
        %v1593 = vpop.f32.mrb[0].mxu0
        %v1594 = vadd.f32 %v1410, %v1593
        %v1595 = vpop.f32.mrb[0].mxu0
        %1596 = vmatprep.mubr.bf16.mxu0 %v1356
        %1597 = vmatmul.mubr.bf16.gmra.mrb[0].mxu0 %v1355
        %v1598 = vpop.f32.mrb[0].mxu0
        %v1599 = vadd.f32 %v1410, %v1598
        %v1600 = vpop.f32.mrb[0].mxu0
        %v1601 = vpop.f32.mrb[0].mxu0
        %v1602 = vadd.f32 %v1410, %v1601
        %v1603 = vpop.f32.mrb[0].mxu0
        %1604 = vmatprep.mubr.bf16.mxu0 %v1358
        %1605 = vmatmul.mubr.bf16.gmra.mrb[0].mxu0 %v1357
        %v1606 = vpop.f32.mrb[0].mxu0
        %v1607 = vadd.f32 %v1410, %v1606
        %v1608 = vpop.f32.mrb[0].mxu0
        %v1609 = vpop.f32.mrb[0].mxu0
        %v1610 = vadd.f32 %v1410, %v1609
        %v1611 = vpop.f32.mrb[0].mxu0
        %1612 = vmatprep.mubr.bf16.mxu0 %v1360
        %1613 = vmatmul.mubr.bf16.gmra.mrb[0].mxu0 %v1359
        %v1614 = vpop.f32.mrb[0].mxu0
        %v1615 = vadd.f32 %v1410, %v1614
        %v1616 = vpop.f32.mrb[0].mxu0
        %v1617 = vpop.f32.mrb[0].mxu0
        %v1618 = vadd.f32 %v1410, %v1617
        %v1619 = vpop.f32.mrb[0].mxu0
        %1620 = vmatprep.mubr.bf16.mxu0 %v1362
        %1621 = vmatmul.mubr.bf16.gmra.mrb[0].mxu0 %v1361
        %v1622 = vpop.f32.mrb[0].mxu0
        %v1623 = vadd.f32 %v1410, %v1622
        %v1624 = vpop.f32.mrb[0].mxu0
        %v1625 = vpop.f32.mrb[0].mxu0
        %v1626 = vadd.f32 %v1410, %v1625
        %v1627 = vpop.f32.mrb[0].mxu0
        %1628 = vmatprep.mubr.bf16.mxu0 %v1364
        %1629 = vmatmul.mubr.bf16.gmra.mrb[0].mxu0 %v1363
        %v1630 = vpop.f32.mrb[0].mxu0
        %v1631 = vadd.f32 %v1410, %v1630
        %v1632 = vpop.f32.mrb[0].mxu0
        %v1633 = vpop.f32.mrb[0].mxu0
        %v1634 = vadd.f32 %v1410, %v1633
        %v1635 = vpop.f32.mrb[0].mxu0
        %1636 = vmatprep.mubr.bf16.mxu0 %v1366
        %1637 = vmatmul.mubr.bf16.gmra.mrb[0].mxu0 %v1365
        %v1638 = vpop.f32.mrb[0].mxu0
        %v1639 = vadd.f32 %v1410, %v1638
        %v1640 = vpop.f32.mrb[0].mxu0
        %v1641 = vpop.f32.mrb[0].mxu0
        %v1642 = vadd.f32 %v1410, %v1641
        %v1643 = vpop.f32.mrb[0].mxu0
        %1644 = vmatprep.mubr.bf16.mxu0 %v1368
        %1645 = vmatmul.mubr.bf16.gmra.mrb[0].mxu0 %v1367
        %v1646 = vpop.f32.mrb[0].mxu0
        %v1647 = vadd.f32 %v1410, %v1646
        %v1648 = vpop.f32.mrb[0].mxu0
        %v1649 = vpop.f32.mrb[0].mxu0
        %v1650 = vadd.f32 %v1410, %v1649
        %v1651 = vpop.f32.mrb[0].mxu0
        %1652 = vmatprep.mubr.bf16.mxu0 %v1370
        %1653 = vmatmul.mubr.bf16.gmra.mrb[0].mxu0 %v1369
        %v1654 = vpop.f32.mrb[0].mxu0
        %v1655 = vadd.f32 %v1410, %v1654
        %v1656 = vpop.f32.mrb[0].mxu0
        %v1657 = vpop.f32.mrb[0].mxu0
        %v1658 = vadd.f32 %v1410, %v1657
        %v1659 = vpop.f32.mrb[0].mxu0
        %1660 = vmatprep.mubr.bf16.mxu0 %v1372
        %1661 = vmatmul.mubr.bf16.gmra.mrb[0].mxu0 %v1371
        %v1662 = vpop.f32.mrb[0].mxu0
        %v1663 = vadd.f32 %v1410, %v1662
        %v1664 = vpop.f32.mrb[0].mxu0
        %v1665 = vpop.f32.mrb[0].mxu0
        %v1666 = vadd.f32 %v1410, %v1665
        %v1667 = vpop.f32.mrb[0].mxu0
        %1668 = vdwg.mxu0
        %v1669 = vmax.f32 %v1543, 0.0
        %v1670 = vmax.f32 %v1546, 0.0
        %v1671 = vmax.f32 %v1551, 0.0
        %v1672 = vmax.f32 %v1554, 0.0
        %v1673 = vmax.f32 %v1559, 0.0
        %v1674 = vmax.f32 %v1562, 0.0
        %v1675 = vmax.f32 %v1567, 0.0
        %v1676 = vmax.f32 %v1570, 0.0
        %v1677 = vmax.f32 %v1575, 0.0
        %v1678 = vmax.f32 %v1578, 0.0
        %v1679 = vmax.f32 %v1583, 0.0
        %v1680 = vmax.f32 %v1586, 0.0
        %v1681 = vmax.f32 %v1591, 0.0
        %v1682 = vmax.f32 %v1594, 0.0
        %v1683 = vmax.f32 %v1599, 0.0
        %v1684 = vmax.f32 %v1602, 0.0
        %v1685 = vmax.f32 %v1607, 0.0
        %v1686 = vmax.f32 %v1610, 0.0
        %v1687 = vmax.f32 %v1615, 0.0
        %v1688 = vmax.f32 %v1618, 0.0
        %v1689 = vmax.f32 %v1623, 0.0
        %v1690 = vmax.f32 %v1626, 0.0
        %v1691 = vmax.f32 %v1631, 0.0
        %v1692 = vmax.f32 %v1634, 0.0
        %v1693 = vmax.f32 %v1639, 0.0
        %v1694 = vmax.f32 %v1642, 0.0
        %v1695 = vmax.f32 %v1647, 0.0
        %v1696 = vmax.f32 %v1650, 0.0
        %v1697 = vmax.f32 %v1655, 0.0
        %v1698 = vmax.f32 %v1658, 0.0
        %v1699 = vmax.f32 %v1663, 0.0
        %v1700 = vmax.f32 %v1666, 0.0
        %v1701 = vpack.c.bf16 %v1670, %v1669
        %v1702 = vpack.c.bf16 %v1672, %v1671
        %v1703 = vpack.c.bf16 %v1674, %v1673
        %v1704 = vpack.c.bf16 %v1676, %v1675
        %v1705 = vpack.c.bf16 %v1678, %v1677
        %v1706 = vpack.c.bf16 %v1680, %v1679
        %v1707 = vpack.c.bf16 %v1682, %v1681
        %v1708 = vpack.c.bf16 %v1684, %v1683
        %v1709 = vpack.c.bf16 %v1686, %v1685
        %v1710 = vpack.c.bf16 %v1688, %v1687
        %v1711 = vpack.c.bf16 %v1690, %v1689
        %v1712 = vpack.c.bf16 %v1692, %v1691
        %v1713 = vpack.c.bf16 %v1694, %v1693
        %v1714 = vpack.c.bf16 %v1696, %v1695
        %v1715 = vpack.c.bf16 %v1698, %v1697
        %v1716 = vpack.c.bf16 %v1700, %v1699
        %v1717 = vld [vmem:[%s7] sm:$0xf]
        %v1718 = vld [vmem:[%s7 + $0x4] sm:$0xf]
        %v1719 = vld [vmem:[%s7 + $0x8] sm:$0xf]
        %v1720 = vld [vmem:[%s7 + $0xc] sm:$0xf]
        %v1721 = vld [vmem:[%s7 + $0x10] sm:$0xf]
        %v1722 = vld [vmem:[%s7 + $0x14] sm:$0xf]
        %v1723 = vld [vmem:[%s7 + $0x18] sm:$0xf]
        %v1724 = vld [vmem:[%s7 + $0x1c] sm:$0xf]
        %v1725 = vld [vmem:[%s7 + $0x20] sm:$0xf]
        %v1726 = vld [vmem:[%s7 + $0x24] sm:$0xf]
        %v1727 = vld [vmem:[%s7 + $0x28] sm:$0xf]
        %v1728 = vld [vmem:[%s7 + $0x2c] sm:$0xf]
        %v1729 = vld [vmem:[%s7 + $0x30] sm:$0xf]
        %v1730 = vld [vmem:[%s7 + $0x34] sm:$0xf]
        %v1731 = vld [vmem:[%s7 + $0x38] sm:$0xf]
        %v1732 = vld [vmem:[%s7 + $0x3c] sm:$0xf]
        %v1733 = vld [vmem:[%s8] sm:$0x1]
        %v1735 = vlaneseq
        %v1736 = vshrl.u32 %v1735, 7
        %v1737 = vsub.s32 0, %v1736
        %v1738 = vrot.slane %v1733, %v1737
        %v1756 = vunpack.c.l.b16 %v1717
        %v1757 = vunpack.c.l.b16 %v1718
        %v1758 = vunpack.c.l.b16 %v1719
        %v1759 = vunpack.c.l.b16 %v1720
        %v1760 = vunpack.c.l.b16 %v1721
        %v1761 = vunpack.c.l.b16 %v1722
        %v1762 = vunpack.c.l.b16 %v1723
        %v1763 = vunpack.c.l.b16 %v1724
        %v1764 = vunpack.c.l.b16 %v1725
        %v1765 = vunpack.c.l.b16 %v1726
        %v1766 = vunpack.c.l.b16 %v1727
        %v1767 = vunpack.c.l.b16 %v1728
        %v1768 = vunpack.c.l.b16 %v1729
        %v1769 = vunpack.c.l.b16 %v1730
        %v1770 = vunpack.c.l.b16 %v1731
        %v1771 = vunpack.c.l.b16 %v1732
        %v1772 = vpack.c.b16 %v1757, %v1756
        %v1773 = vpack.c.b16 %v1759, %v1758
        %v1774 = vpack.c.b16 %v1761, %v1760
        %v1775 = vpack.c.b16 %v1763, %v1762
        %v1776 = vpack.c.b16 %v1765, %v1764
        %v1777 = vpack.c.b16 %v1767, %v1766
        %v1778 = vpack.c.b16 %v1769, %v1768
        %v1779 = vpack.c.b16 %v1771, %v1770
        %1788 = vmatprep.subr.bf16.mxu0 0
        %1789 = vmatpush1.bf16.msra.mxu0 %v1772
        %1790 = vmatprep.subr.bf16.mxu0 0
        %1791 = vmatpush1.bf16.msra.mxu0 %v1773
        %1792 = vmatprep.subr.bf16.mxu0 0
        %1793 = vmatpush1.bf16.msra.mxu0 %v1774
        %1794 = vmatprep.subr.bf16.mxu0 0
        %1795 = vmatpush1.bf16.msra.mxu0 %v1775
        %1796 = vmatprep.subr.bf16.mxu0 0
        %1797 = vmatpush1.bf16.msra.mxu0 %v1776
        %1798 = vmatprep.subr.bf16.mxu0 0
        %1799 = vmatpush1.bf16.msra.mxu0 %v1777
        %1800 = vmatprep.subr.bf16.mxu0 0
        %1801 = vmatpush1.bf16.msra.mxu0 %v1778
        %1802 = vmatprep.subr.bf16.mxu0 0
        %1803 = vmatpush1.bf16.msra.mxu0 %v1779
        %1804 = vmatprep.subr.bf16.mxu0 0
        %1805 = vmatpush1.bf16.msra.mxu0 0
        %1806 = vmatprep.subr.bf16.mxu0 0
        %1807 = vmatpush1.bf16.msra.mxu0 0
        %1808 = vmatprep.subr.bf16.mxu0 0
        %1809 = vmatpush1.bf16.msra.mxu0 0
        %1810 = vmatprep.subr.bf16.mxu0 0
        %1811 = vmatpush1.bf16.msra.mxu0 0
        %1812 = vmatprep.subr.bf16.mxu0 0
        %1813 = vmatpush1.bf16.msra.mxu0 0
        %1814 = vmatprep.subr.bf16.mxu0 0
        %1815 = vmatpush1.bf16.msra.mxu0 0
        %1816 = vmatprep.subr.bf16.mxu0 0
        %1817 = vmatpush1.bf16.msra.mxu0 0
        %1818 = vmatprep.subr.bf16.mxu0 0
        %1819 = vmatpush1.bf16.msra.mxu0 0
        %1820 = vmatprep.mubr.bf16.mxu0 0
        %1821 = vmatmul.mubr.bf16.gmra.mrb[0].mxu0 %v1701
        %v1822 = vpop.f32.mrb[0].mxu0
        %v1823 = vadd.f32 %v1738, %v1822
        %v1824 = vpop.f32.mrb[0].mxu0
        %v1825 = vpop.f32.mrb[0].mxu0
        %v1826 = vadd.f32 %v1738, %v1825
        %v1827 = vpop.f32.mrb[0].mxu0
        %1828 = vmatprep.mubr.bf16.mxu0 0
        %1829 = vmatmul.mubr.bf16.gmra.mrb[0].mxu0 %v1702
        %v1830 = vpop.f32.mrb[0].mxu0
        %v1831 = vadd.f32 %v1738, %v1830
        %v1832 = vpop.f32.mrb[0].mxu0
        %v1833 = vpop.f32.mrb[0].mxu0
        %v1834 = vadd.f32 %v1738, %v1833
        %v1835 = vpop.f32.mrb[0].mxu0
        %1836 = vmatprep.mubr.bf16.mxu0 0
        %1837 = vmatmul.mubr.bf16.gmra.mrb[0].mxu0 %v1703
        %v1838 = vpop.f32.mrb[0].mxu0
        %v1839 = vadd.f32 %v1738, %v1838
        %v1840 = vpop.f32.mrb[0].mxu0
        %v1841 = vpop.f32.mrb[0].mxu0
        %v1842 = vadd.f32 %v1738, %v1841
        %v1843 = vpop.f32.mrb[0].mxu0
        %1844 = vmatprep.mubr.bf16.mxu0 0
        %1845 = vmatmul.mubr.bf16.gmra.mrb[0].mxu0 %v1704
        %v1846 = vpop.f32.mrb[0].mxu0
        %v1847 = vadd.f32 %v1738, %v1846
        %v1848 = vpop.f32.mrb[0].mxu0
        %v1849 = vpop.f32.mrb[0].mxu0
        %v1850 = vadd.f32 %v1738, %v1849
        %v1851 = vpop.f32.mrb[0].mxu0
        %1852 = vmatprep.mubr.bf16.mxu0 0
        %1853 = vmatmul.mubr.bf16.gmra.mrb[0].mxu0 %v1705
        %v1854 = vpop.f32.mrb[0].mxu0
        %v1855 = vadd.f32 %v1738, %v1854
        %v1856 = vpop.f32.mrb[0].mxu0
        %v1857 = vpop.f32.mrb[0].mxu0
        %v1858 = vadd.f32 %v1738, %v1857
        %v1859 = vpop.f32.mrb[0].mxu0
        %1860 = vmatprep.mubr.bf16.mxu0 0
        %1861 = vmatmul.mubr.bf16.gmra.mrb[0].mxu0 %v1706
        %v1862 = vpop.f32.mrb[0].mxu0
        %v1863 = vadd.f32 %v1738, %v1862
        %v1864 = vpop.f32.mrb[0].mxu0
        %v1865 = vpop.f32.mrb[0].mxu0
        %v1866 = vadd.f32 %v1738, %v1865
        %v1867 = vpop.f32.mrb[0].mxu0
        %1868 = vmatprep.mubr.bf16.mxu0 0
        %1869 = vmatmul.mubr.bf16.gmra.mrb[0].mxu0 %v1707
        %v1870 = vpop.f32.mrb[0].mxu0
        %v1871 = vadd.f32 %v1738, %v1870
        %v1872 = vpop.f32.mrb[0].mxu0
        %v1873 = vpop.f32.mrb[0].mxu0
        %v1874 = vadd.f32 %v1738, %v1873
        %v1875 = vpop.f32.mrb[0].mxu0
        %1876 = vmatprep.mubr.bf16.mxu0 0
        %1877 = vmatmul.mubr.bf16.gmra.mrb[0].mxu0 %v1708
        %v1878 = vpop.f32.mrb[0].mxu0
        %v1879 = vadd.f32 %v1738, %v1878
        %v1880 = vpop.f32.mrb[0].mxu0
        %v1881 = vpop.f32.mrb[0].mxu0
        %v1882 = vadd.f32 %v1738, %v1881
        %v1883 = vpop.f32.mrb[0].mxu0
        %1884 = vmatprep.mubr.bf16.mxu0 0
        %1885 = vmatmul.mubr.bf16.gmra.mrb[0].mxu0 %v1709
        %v1886 = vpop.f32.mrb[0].mxu0
        %v1887 = vadd.f32 %v1738, %v1886
        %v1888 = vpop.f32.mrb[0].mxu0
        %v1889 = vpop.f32.mrb[0].mxu0
        %v1890 = vadd.f32 %v1738, %v1889
        %v1891 = vpop.f32.mrb[0].mxu0
        %1892 = vmatprep.mubr.bf16.mxu0 0
        %1893 = vmatmul.mubr.bf16.gmra.mrb[0].mxu0 %v1710
        %v1894 = vpop.f32.mrb[0].mxu0
        %v1895 = vadd.f32 %v1738, %v1894
        %v1896 = vpop.f32.mrb[0].mxu0
        %v1897 = vpop.f32.mrb[0].mxu0
        %v1898 = vadd.f32 %v1738, %v1897
        %v1899 = vpop.f32.mrb[0].mxu0
        %1900 = vmatprep.mubr.bf16.mxu0 0
        %1901 = vmatmul.mubr.bf16.gmra.mrb[0].mxu0 %v1711
        %v1902 = vpop.f32.mrb[0].mxu0
        %v1903 = vadd.f32 %v1738, %v1902
        %v1904 = vpop.f32.mrb[0].mxu0
        %v1905 = vpop.f32.mrb[0].mxu0
        %v1906 = vadd.f32 %v1738, %v1905
        %v1907 = vpop.f32.mrb[0].mxu0
        %1908 = vmatprep.mubr.bf16.mxu0 0
        %1909 = vmatmul.mubr.bf16.gmra.mrb[0].mxu0 %v1712
        %v1910 = vpop.f32.mrb[0].mxu0
        %v1911 = vadd.f32 %v1738, %v1910
        %v1912 = vpop.f32.mrb[0].mxu0
        %v1913 = vpop.f32.mrb[0].mxu0
        %v1914 = vadd.f32 %v1738, %v1913
        %v1915 = vpop.f32.mrb[0].mxu0
        %1916 = vmatprep.mubr.bf16.mxu0 0
        %1917 = vmatmul.mubr.bf16.gmra.mrb[0].mxu0 %v1713
        %v1918 = vpop.f32.mrb[0].mxu0
        %v1919 = vadd.f32 %v1738, %v1918
        %v1920 = vpop.f32.mrb[0].mxu0
        %v1921 = vpop.f32.mrb[0].mxu0
        %v1922 = vadd.f32 %v1738, %v1921
        %v1923 = vpop.f32.mrb[0].mxu0
        %1924 = vmatprep.mubr.bf16.mxu0 0
        %1925 = vmatmul.mubr.bf16.gmra.mrb[0].mxu0 %v1714
        %v1926 = vpop.f32.mrb[0].mxu0
        %v1927 = vadd.f32 %v1738, %v1926
        %v1928 = vpop.f32.mrb[0].mxu0
        %v1929 = vpop.f32.mrb[0].mxu0
        %v1930 = vadd.f32 %v1738, %v1929
        %v1931 = vpop.f32.mrb[0].mxu0
        %1932 = vmatprep.mubr.bf16.mxu0 0
        %1933 = vmatmul.mubr.bf16.gmra.mrb[0].mxu0 %v1715
        %v1934 = vpop.f32.mrb[0].mxu0
        %v1935 = vadd.f32 %v1738, %v1934
        %v1936 = vpop.f32.mrb[0].mxu0
        %v1937 = vpop.f32.mrb[0].mxu0
        %v1938 = vadd.f32 %v1738, %v1937
        %v1939 = vpop.f32.mrb[0].mxu0
        %1940 = vmatprep.mubr.bf16.mxu0 0
        %1941 = vmatmul.mubr.bf16.gmra.mrb[0].mxu0 %v1716
        %v1942 = vpop.f32.mrb[0].mxu0
        %v1943 = vadd.f32 %v1738, %v1942
        %v1944 = vpop.f32.mrb[0].mxu0
        %v1945 = vpop.f32.mrb[0].mxu0
        %v1946 = vadd.f32 %v1738, %v1945
        %v1947 = vpop.f32.mrb[0].mxu0
        %1948 = vdwg.mxu0
        %1949 = vmax.xlane.f32.xlu0 %v1823
        %v1950 = vpop.xlane.xlu0 %1949
        %1951 = vmax.xlane.f32.xlu0 %v1826
        %v1952 = vpop.xlane.xlu0 %1951
        %1953 = vmax.xlane.f32.xlu0 %v1831
        %v1954 = vpop.xlane.xlu0 %1953
        %1955 = vmax.xlane.f32.xlu0 %v1834
        %v1956 = vpop.xlane.xlu0 %1955
        %1957 = vmax.xlane.f32.xlu0 %v1839
        %v1958 = vpop.xlane.xlu0 %1957
        %1959 = vmax.xlane.f32.xlu0 %v1842
        %v1960 = vpop.xlane.xlu0 %1959
        %1961 = vmax.xlane.f32.xlu0 %v1847
        %v1962 = vpop.xlane.xlu0 %1961
        %1963 = vmax.xlane.f32.xlu0 %v1850
        %v1964 = vpop.xlane.xlu0 %1963
        %1965 = vmax.xlane.f32.xlu0 %v1855
        %v1966 = vpop.xlane.xlu0 %1965
        %1967 = vmax.xlane.f32.xlu0 %v1858
        %v1968 = vpop.xlane.xlu0 %1967
        %1969 = vmax.xlane.f32.xlu0 %v1863
        %v1970 = vpop.xlane.xlu0 %1969
        %1971 = vmax.xlane.f32.xlu0 %v1866
        %v1972 = vpop.xlane.xlu0 %1971
        %1973 = vmax.xlane.f32.xlu0 %v1871
        %v1974 = vpop.xlane.xlu0 %1973
        %1975 = vmax.xlane.f32.xlu0 %v1874
        %v1976 = vpop.xlane.xlu0 %1975
        %1977 = vmax.xlane.f32.xlu0 %v1879
        %v1978 = vpop.xlane.xlu0 %1977
        %1979 = vmax.xlane.f32.xlu0 %v1882
        %v1980 = vpop.xlane.xlu0 %1979
        %1981 = vmax.xlane.f32.xlu0 %v1887
        %v1982 = vpop.xlane.xlu0 %1981
        %1983 = vmax.xlane.f32.xlu0 %v1890
        %v1984 = vpop.xlane.xlu0 %1983
        %1985 = vmax.xlane.f32.xlu0 %v1895
        %v1986 = vpop.xlane.xlu0 %1985
        %1987 = vmax.xlane.f32.xlu0 %v1898
        %v1988 = vpop.xlane.xlu0 %1987
        %1989 = vmax.xlane.f32.xlu0 %v1903
        %v1990 = vpop.xlane.xlu0 %1989
        %1991 = vmax.xlane.f32.xlu0 %v1906
        %v1992 = vpop.xlane.xlu0 %1991
        %1993 = vmax.xlane.f32.xlu0 %v1911
        %v1994 = vpop.xlane.xlu0 %1993
        %1995 = vmax.xlane.f32.xlu0 %v1914
        %v1996 = vpop.xlane.xlu0 %1995
        %1997 = vmax.xlane.f32.xlu0 %v1919
        %v1998 = vpop.xlane.xlu0 %1997
        %1999 = vmax.xlane.f32.xlu0 %v1922
        %v2000 = vpop.xlane.xlu0 %1999
        %2001 = vmax.xlane.f32.xlu0 %v1927
        %v2002 = vpop.xlane.xlu0 %2001
        %2003 = vmax.xlane.f32.xlu0 %v1930
        %v2004 = vpop.xlane.xlu0 %2003
        %2005 = vmax.xlane.f32.xlu0 %v1935
        %v2006 = vpop.xlane.xlu0 %2005
        %2007 = vmax.xlane.f32.xlu0 %v1938
        %v2008 = vpop.xlane.xlu0 %2007
        %2009 = vmax.xlane.f32.xlu0 %v1943
        %v2010 = vpop.xlane.xlu0 %2009
        %2011 = vmax.xlane.f32.xlu0 %v1946
        %v2012 = vpop.xlane.xlu0 %2011
        %v2013 = vsub.f32 %v1823, %v1950
        %v2014 = vsub.f32 %v1826, %v1952
        %v2015 = vsub.f32 %v1831, %v1954
        %v2016 = vsub.f32 %v1834, %v1956
        %v2017 = vsub.f32 %v1839, %v1958
        %v2018 = vsub.f32 %v1842, %v1960
        %v2019 = vsub.f32 %v1847, %v1962
        %v2020 = vsub.f32 %v1850, %v1964
        %v2021 = vsub.f32 %v1855, %v1966
        %v2022 = vsub.f32 %v1858, %v1968
        %v2023 = vsub.f32 %v1863, %v1970
        %v2024 = vsub.f32 %v1866, %v1972
        %v2025 = vsub.f32 %v1871, %v1974
        %v2026 = vsub.f32 %v1874, %v1976
        %v2027 = vsub.f32 %v1879, %v1978
        %v2028 = vsub.f32 %v1882, %v1980
        %v2029 = vsub.f32 %v1887, %v1982
        %v2030 = vsub.f32 %v1890, %v1984
        %v2031 = vsub.f32 %v1895, %v1986
        %v2032 = vsub.f32 %v1898, %v1988
        %v2033 = vsub.f32 %v1903, %v1990
        %v2034 = vsub.f32 %v1906, %v1992
        %v2035 = vsub.f32 %v1911, %v1994
        %v2036 = vsub.f32 %v1914, %v1996
        %v2037 = vsub.f32 %v1919, %v1998
        %v2038 = vsub.f32 %v1922, %v2000
        %v2039 = vsub.f32 %v1927, %v2002
        %v2040 = vsub.f32 %v1930, %v2004
        %v2041 = vsub.f32 %v1935, %v2006
        %v2042 = vsub.f32 %v1938, %v2008
        %v2043 = vsub.f32 %v1943, %v2010
        %v2044 = vsub.f32 %v1946, %v2012
        %v2045 = vmul.f32 %v2013, 1.442695
        %v2046 = vpow.pop %v2045
        %v2047 = vmul.f32 %v2014, 1.442695
        %v2048 = vpow.pop %v2047
        %v2049 = vmul.f32 %v2015, 1.442695
        %v2050 = vpow.pop %v2049
        %v2051 = vmul.f32 %v2016, 1.442695
        %v2052 = vpow.pop %v2051
        %v2053 = vmul.f32 %v2017, 1.442695
        %v2054 = vpow.pop %v2053
        %v2055 = vmul.f32 %v2018, 1.442695
        %v2056 = vpow.pop %v2055
        %v2057 = vmul.f32 %v2019, 1.442695
        %v2058 = vpow.pop %v2057
        %v2059 = vmul.f32 %v2020, 1.442695
        %v2060 = vpow.pop %v2059
        %v2061 = vmul.f32 %v2021, 1.442695
        %v2062 = vpow.pop %v2061
        %v2063 = vmul.f32 %v2022, 1.442695
        %v2064 = vpow.pop %v2063
        %v2065 = vmul.f32 %v2023, 1.442695
        %v2066 = vpow.pop %v2065
        %v2067 = vmul.f32 %v2024, 1.442695
        %v2068 = vpow.pop %v2067
        %v2069 = vmul.f32 %v2025, 1.442695
        %v2070 = vpow.pop %v2069
        %v2071 = vmul.f32 %v2026, 1.442695
        %v2072 = vpow.pop %v2071
        %v2073 = vmul.f32 %v2027, 1.442695
        %v2074 = vpow.pop %v2073
        %v2075 = vmul.f32 %v2028, 1.442695
        %v2076 = vpow.pop %v2075
        %v2077 = vmul.f32 %v2029, 1.442695
        %v2078 = vpow.pop %v2077
        %v2079 = vmul.f32 %v2030, 1.442695
        %v2080 = vpow.pop %v2079
        %v2081 = vmul.f32 %v2031, 1.442695
        %v2082 = vpow.pop %v2081
        %v2083 = vmul.f32 %v2032, 1.442695
        %v2084 = vpow.pop %v2083
        %v2085 = vmul.f32 %v2033, 1.442695
        %v2086 = vpow.pop %v2085
        %v2087 = vmul.f32 %v2034, 1.442695
        %v2088 = vpow.pop %v2087
        %v2089 = vmul.f32 %v2035, 1.442695
        %v2090 = vpow.pop %v2089
        %v2091 = vmul.f32 %v2036, 1.442695
        %v2092 = vpow.pop %v2091
        %v2093 = vmul.f32 %v2037, 1.442695
        %v2094 = vpow.pop %v2093
        %v2095 = vmul.f32 %v2038, 1.442695
        %v2096 = vpow.pop %v2095
        %v2097 = vmul.f32 %v2039, 1.442695
        %v2098 = vpow.pop %v2097
        %v2099 = vmul.f32 %v2040, 1.442695
        %v2100 = vpow.pop %v2099
        %v2101 = vmul.f32 %v2041, 1.442695
        %v2102 = vpow.pop %v2101
        %v2103 = vmul.f32 %v2042, 1.442695
        %v2104 = vpow.pop %v2103
        %v2105 = vmul.f32 %v2043, 1.442695
        %v2106 = vpow.pop %v2105
        %v2107 = vmul.f32 %v2044, 1.442695
        %v2108 = vpow.pop %v2107
        %2109 = vadd.xlane.f32.xlu0 %v2046
        %v2110 = vpop.xlane.xlu0 %2109
        %2111 = vadd.xlane.f32.xlu0 %v2048
        %v2112 = vpop.xlane.xlu0 %2111
        %2113 = vadd.xlane.f32.xlu0 %v2050
        %v2114 = vpop.xlane.xlu0 %2113
        %2115 = vadd.xlane.f32.xlu0 %v2052
        %v2116 = vpop.xlane.xlu0 %2115
        %2117 = vadd.xlane.f32.xlu0 %v2054
        %v2118 = vpop.xlane.xlu0 %2117
        %2119 = vadd.xlane.f32.xlu0 %v2056
        %v2120 = vpop.xlane.xlu0 %2119
        %2121 = vadd.xlane.f32.xlu0 %v2058
        %v2122 = vpop.xlane.xlu0 %2121
        %2123 = vadd.xlane.f32.xlu0 %v2060
        %v2124 = vpop.xlane.xlu0 %2123
        %2125 = vadd.xlane.f32.xlu0 %v2062
        %v2126 = vpop.xlane.xlu0 %2125
        %2127 = vadd.xlane.f32.xlu0 %v2064
        %v2128 = vpop.xlane.xlu0 %2127
        %2129 = vadd.xlane.f32.xlu0 %v2066
        %v2130 = vpop.xlane.xlu0 %2129
        %2131 = vadd.xlane.f32.xlu0 %v2068
        %v2132 = vpop.xlane.xlu0 %2131
        %2133 = vadd.xlane.f32.xlu0 %v2070
        %v2134 = vpop.xlane.xlu0 %2133
        %2135 = vadd.xlane.f32.xlu0 %v2072
        %v2136 = vpop.xlane.xlu0 %2135
        %2137 = vadd.xlane.f32.xlu0 %v2074
        %v2138 = vpop.xlane.xlu0 %2137
        %2139 = vadd.xlane.f32.xlu0 %v2076
        %v2140 = vpop.xlane.xlu0 %2139
        %2141 = vadd.xlane.f32.xlu0 %v2078
        %v2142 = vpop.xlane.xlu0 %2141
        %2143 = vadd.xlane.f32.xlu0 %v2080
        %v2144 = vpop.xlane.xlu0 %2143
        %2145 = vadd.xlane.f32.xlu0 %v2082
        %v2146 = vpop.xlane.xlu0 %2145
        %2147 = vadd.xlane.f32.xlu0 %v2084
        %v2148 = vpop.xlane.xlu0 %2147
        %2149 = vadd.xlane.f32.xlu0 %v2086
        %v2150 = vpop.xlane.xlu0 %2149
        %2151 = vadd.xlane.f32.xlu0 %v2088
        %v2152 = vpop.xlane.xlu0 %2151
        %2153 = vadd.xlane.f32.xlu0 %v2090
        %v2154 = vpop.xlane.xlu0 %2153
        %2155 = vadd.xlane.f32.xlu0 %v2092
        %v2156 = vpop.xlane.xlu0 %2155
        %2157 = vadd.xlane.f32.xlu0 %v2094
        %v2158 = vpop.xlane.xlu0 %2157
        %2159 = vadd.xlane.f32.xlu0 %v2096
        %v2160 = vpop.xlane.xlu0 %2159
        %2161 = vadd.xlane.f32.xlu0 %v2098
        %v2162 = vpop.xlane.xlu0 %2161
        %2163 = vadd.xlane.f32.xlu0 %v2100
        %v2164 = vpop.xlane.xlu0 %2163
        %2165 = vadd.xlane.f32.xlu0 %v2102
        %v2166 = vpop.xlane.xlu0 %2165
        %2167 = vadd.xlane.f32.xlu0 %v2104
        %v2168 = vpop.xlane.xlu0 %2167
        %2169 = vadd.xlane.f32.xlu0 %v2106
        %v2170 = vpop.xlane.xlu0 %2169
        %2171 = vadd.xlane.f32.xlu0 %v2108
        %v2172 = vpop.xlane.xlu0 %2171
        %v2173 = vrcp.pop %v2110
        %v2174 = vrcp.pop %v2112
        %v2175 = vrcp.pop %v2114
        %v2176 = vrcp.pop %v2116
        %v2177 = vrcp.pop %v2118
        %v2178 = vrcp.pop %v2120
        %v2179 = vrcp.pop %v2122
        %v2180 = vrcp.pop %v2124
        %v2181 = vrcp.pop %v2126
        %v2182 = vrcp.pop %v2128
        %v2183 = vrcp.pop %v2130
        %v2184 = vrcp.pop %v2132
        %v2185 = vrcp.pop %v2134
        %v2186 = vrcp.pop %v2136
        %v2187 = vrcp.pop %v2138
        %v2188 = vrcp.pop %v2140
        %v2189 = vrcp.pop %v2142
        %v2190 = vrcp.pop %v2144
        %v2191 = vrcp.pop %v2146
        %v2192 = vrcp.pop %v2148
        %v2193 = vrcp.pop %v2150
        %v2194 = vrcp.pop %v2152
        %v2195 = vrcp.pop %v2154
        %v2196 = vrcp.pop %v2156
        %v2197 = vrcp.pop %v2158
        %v2198 = vrcp.pop %v2160
        %v2199 = vrcp.pop %v2162
        %v2200 = vrcp.pop %v2164
        %v2201 = vrcp.pop %v2166
        %v2202 = vrcp.pop %v2168
        %v2203 = vrcp.pop %v2170
        %v2204 = vrcp.pop %v2172
        %v2205 = vmul.f32 %v2046, %v2173
        %v2206 = vmul.f32 %v2048, %v2174
        %v2207 = vmul.f32 %v2050, %v2175
        %v2208 = vmul.f32 %v2052, %v2176
        %v2209 = vmul.f32 %v2054, %v2177
        %v2210 = vmul.f32 %v2056, %v2178
        %v2211 = vmul.f32 %v2058, %v2179
        %v2212 = vmul.f32 %v2060, %v2180
        %v2213 = vmul.f32 %v2062, %v2181
        %v2214 = vmul.f32 %v2064, %v2182
        %v2215 = vmul.f32 %v2066, %v2183
        %v2216 = vmul.f32 %v2068, %v2184
        %v2217 = vmul.f32 %v2070, %v2185
        %v2218 = vmul.f32 %v2072, %v2186
        %v2219 = vmul.f32 %v2074, %v2187
        %v2220 = vmul.f32 %v2076, %v2188
        %v2221 = vmul.f32 %v2078, %v2189
        %v2222 = vmul.f32 %v2080, %v2190
        %v2223 = vmul.f32 %v2082, %v2191
        %v2224 = vmul.f32 %v2084, %v2192
        %v2225 = vmul.f32 %v2086, %v2193
        %v2226 = vmul.f32 %v2088, %v2194
        %v2227 = vmul.f32 %v2090, %v2195
        %v2228 = vmul.f32 %v2092, %v2196
        %v2229 = vmul.f32 %v2094, %v2197
        %v2230 = vmul.f32 %v2096, %v2198
        %v2231 = vmul.f32 %v2098, %v2199
        %v2232 = vmul.f32 %v2100, %v2200
        %v2233 = vmul.f32 %v2102, %v2201
        %v2234 = vmul.f32 %v2104, %v2202
        %v2235 = vmul.f32 %v2106, %v2203
        %v2236 = vmul.f32 %v2108, %v2204
        %v2237 = vpack.c.bf16 %v2206, %v2205
        %v2238 = vpack.c.bf16 %v2208, %v2207
        %v2239 = vpack.c.bf16 %v2210, %v2209
        %v2240 = vpack.c.bf16 %v2212, %v2211
        %v2241 = vpack.c.bf16 %v2214, %v2213
        %v2242 = vpack.c.bf16 %v2216, %v2215
        %v2243 = vpack.c.bf16 %v2218, %v2217
        %v2244 = vpack.c.bf16 %v2220, %v2219
        %v2245 = vpack.c.bf16 %v2222, %v2221
        %v2246 = vpack.c.bf16 %v2224, %v2223
        %v2247 = vpack.c.bf16 %v2226, %v2225
        %v2248 = vpack.c.bf16 %v2228, %v2227
        %v2249 = vpack.c.bf16 %v2230, %v2229
        %v2250 = vpack.c.bf16 %v2232, %v2231
        %v2251 = vpack.c.bf16 %v2234, %v2233
        %v2252 = vpack.c.bf16 %v2236, %v2235
        %v2269 = vunpack.c.l.b16 %v2237
        %v2270 = vunpack.c.h.b16 %v2237
        %v2271 = vunpack.c.l.b16 %v2238
        %v2272 = vunpack.c.h.b16 %v2238
        %v2273 = vunpack.c.l.b16 %v2239
        %v2274 = vunpack.c.h.b16 %v2239
        %v2275 = vunpack.c.l.b16 %v2240
        %v2276 = vunpack.c.h.b16 %v2240
        %v2277 = vunpack.c.l.b16 %v2241
        %v2278 = vunpack.c.h.b16 %v2241
        %v2279 = vunpack.c.l.b16 %v2242
        %v2280 = vunpack.c.h.b16 %v2242
        %v2281 = vunpack.c.l.b16 %v2243
        %v2282 = vunpack.c.h.b16 %v2243
        %v2283 = vunpack.c.l.b16 %v2244
        %v2284 = vunpack.c.h.b16 %v2244
        %v2285 = vunpack.c.l.b16 %v2245
        %v2286 = vunpack.c.h.b16 %v2245
        %v2287 = vunpack.c.l.b16 %v2246
        %v2288 = vunpack.c.h.b16 %v2246
        %v2289 = vunpack.c.l.b16 %v2247
        %v2290 = vunpack.c.h.b16 %v2247
        %v2291 = vunpack.c.l.b16 %v2248
        %v2292 = vunpack.c.h.b16 %v2248
        %v2293 = vunpack.c.l.b16 %v2249
        %v2294 = vunpack.c.h.b16 %v2249
        %v2295 = vunpack.c.l.b16 %v2250
        %v2296 = vunpack.c.h.b16 %v2250
        %v2297 = vunpack.c.l.b16 %v2251
        %v2298 = vunpack.c.h.b16 %v2251
        %v2299 = vunpack.c.l.b16 %v2252
        %v2300 = vunpack.c.h.b16 %v2252
        %v2301 = vpack.c.b16 %v2269, %v2269
        %v2302 = vpack.c.b16 %v2270, %v2270
        %v2303 = vpack.c.b16 %v2271, %v2271
        %v2304 = vpack.c.b16 %v2272, %v2272
        %v2305 = vpack.c.b16 %v2273, %v2273
        %v2306 = vpack.c.b16 %v2274, %v2274
        %v2307 = vpack.c.b16 %v2275, %v2275
        %v2308 = vpack.c.b16 %v2276, %v2276
        %v2309 = vpack.c.b16 %v2277, %v2277
        %v2310 = vpack.c.b16 %v2278, %v2278
        %v2311 = vpack.c.b16 %v2279, %v2279
        %v2312 = vpack.c.b16 %v2280, %v2280
        %v2313 = vpack.c.b16 %v2281, %v2281
        %v2314 = vpack.c.b16 %v2282, %v2282
        %v2315 = vpack.c.b16 %v2283, %v2283
        %v2316 = vpack.c.b16 %v2284, %v2284
        %v2317 = vpack.c.b16 %v2285, %v2285
        %v2318 = vpack.c.b16 %v2286, %v2286
        %v2319 = vpack.c.b16 %v2287, %v2287
        %v2320 = vpack.c.b16 %v2288, %v2288
        %v2321 = vpack.c.b16 %v2289, %v2289
        %v2322 = vpack.c.b16 %v2290, %v2290
        %v2323 = vpack.c.b16 %v2291, %v2291
        %v2324 = vpack.c.b16 %v2292, %v2292
        %v2325 = vpack.c.b16 %v2293, %v2293
        %v2326 = vpack.c.b16 %v2294, %v2294
        %v2327 = vpack.c.b16 %v2295, %v2295
        %v2328 = vpack.c.b16 %v2296, %v2296
        %v2329 = vpack.c.b16 %v2297, %v2297
        %v2330 = vpack.c.b16 %v2298, %v2298
        %v2331 = vpack.c.b16 %v2299, %v2299
        %v2332 = vpack.c.b16 %v2300, %v2300
        %2365 = vst [vmem:[%s334] sm:$0xf] %v2301
        %2366 = vst [vmem:[%s334 + $0x4] sm:$0xf] %v2302
        %2367 = vst [vmem:[%s334 + $0x8] sm:$0xf] %v2303
        %2368 = vst [vmem:[%s334 + $0xc] sm:$0xf] %v2304
        %2369 = vst [vmem:[%s334 + $0x10] sm:$0xf] %v2305
        %2370 = vst [vmem:[%s334 + $0x14] sm:$0xf] %v2306
        %2371 = vst [vmem:[%s334 + $0x18] sm:$0xf] %v2307
        %2372 = vst [vmem:[%s334 + $0x1c] sm:$0xf] %v2308
        %2373 = vst [vmem:[%s334 + $0x20] sm:$0xf] %v2309
        %2374 = vst [vmem:[%s334 + $0x24] sm:$0xf] %v2310
        %2375 = vst [vmem:[%s334 + $0x28] sm:$0xf] %v2311
        %2376 = vst [vmem:[%s334 + $0x2c] sm:$0xf] %v2312
        %2377 = vst [vmem:[%s334 + $0x30] sm:$0xf] %v2313
        %2378 = vst [vmem:[%s334 + $0x34] sm:$0xf] %v2314
        %2379 = vst [vmem:[%s334 + $0x38] sm:$0xf] %v2315
        %2380 = vst [vmem:[%s334 + $0x3c] sm:$0xf] %v2316
        %2381 = vst [vmem:[%s334 + $0x40] sm:$0xf] %v2317
        %2382 = vst [vmem:[%s334 + $0x44] sm:$0xf] %v2318
        %2383 = vst [vmem:[%s334 + $0x48] sm:$0xf] %v2319
        %2384 = vst [vmem:[%s334 + $0x4c] sm:$0xf] %v2320
        %2385 = vst [vmem:[%s334 + $0x50] sm:$0xf] %v2321
        %2386 = vst [vmem:[%s334 + $0x54] sm:$0xf] %v2322
        %2387 = vst [vmem:[%s334 + $0x58] sm:$0xf] %v2323
        %2388 = vst [vmem:[%s334 + $0x5c] sm:$0xf] %v2324
        %2389 = vst [vmem:[%s334 + $0x60] sm:$0xf] %v2325
        %2390 = vst [vmem:[%s334 + $0x64] sm:$0xf] %v2326
        %2391 = vst [vmem:[%s334 + $0x68] sm:$0xf] %v2327
        %2392 = vst [vmem:[%s334 + $0x6c] sm:$0xf] %v2328
        %2393 = vst [vmem:[%s334 + $0x70] sm:$0xf] %v2329
        %2394 = vst [vmem:[%s334 + $0x74] sm:$0xf] %v2330
        %2395 = vst [vmem:[%s334 + $0x78] sm:$0xf] %v2331
        %2396 = vst [vmem:[%s334 + $0x7c] sm:$0xf] %v2332
        %s2397 = sand.u32 %s222, 1
        %s2398 = sand.u32 %s222, 1
        %s2399 = smul.addr %s2398, 128
        %s2400 = scalar_lea.vmem [#allocation2], %s2399
        // Predicated region
        $region57: #{intent_classifier_forward.1} parent=55 // pred_check
          %p2401 = pneg %p232
        $region58: #{intent_classifier_forward.1} parent=55 // pred_check_branch
          %2403 = sbr.rel (%p2401) target = $region60
        $region59: #{intent_classifier_forward.1} parent=55 // pred_region
          %s2404 = smul.u32 32, %s20
          %s2405 = ssub.s32 38, %s2404
          %p2406 = scmp.lt.s32.totalorder %s2405, 32
          %s2407 = scalar_select %p2406, %s2405, 32
          %s2408 = smul.u32 64, %s2407
          %p2409 = scmp.ne.s32.totalorder 0, %s2408
          %s2410 = smul.addr %s2404, 4
          %s2411 = scalar_lea.vmem %s9, %s2410
          // Predicated region
          $region61: #{intent_classifier_forward.1} parent=59 // pred_check
            %p2412 = pneg %p2409
          $region62: #{intent_classifier_forward.1} parent=59 // pred_check_branch
            %2414 = sbr.rel (%p2412) target = $region64
          $region63: #{intent_classifier_forward.1} parent=59 // pred_region
            // Predicated region
            $region65: #{intent_classifier_forward.1} parent=63 // pred_check
              _
            $region66: #{intent_classifier_forward.1} parent=63 // pred_check_branch
              %2416 = sbr.rel target = $region68
            $region67: #{intent_classifier_forward.1} parent=63 // pred_region
              // Predicated region
              $region87: #{intent_classifier_forward.1} parent=67 // pred_check
                _
              $region88: #{intent_classifier_forward.1} parent=67 // pred_check_branch
                %2527 = sbr.rel (0) target = $region90
              $region89: #{intent_classifier_forward.1} parent=67 // pred_region
                %s2529 = sshrl.u32 %s2407, 5
                // While loop
                $region91: #{intent_classifier_forward.1} parent=89 // loop_pre_header
                  _
                $region92: #{intent_classifier_forward.1} parent=89 // loop_header
                  %s2531 = sphi 0, %s2533
                  %p2532 = scmp.ge.s32.totalorder %s2531, %s2529
                  %s2536 = sphi 0, %s2605
                  %s2537 = sphi %s2400, %s2608
                  %s2538 = sphi %s2411, %s2609
                $region93: #{intent_classifier_forward.1} parent=89 // loop_header_branch
                  %2535 = sbr.rel (%p2532) target = $region97
                $region94: #{intent_classifier_forward.1} parent=89 // loop_body
                  %v2539 = vld [vmem:[%s2537] sm:$0xf]
                  %2540 = vst [vmem:[%s2538] sm:$0xf] %v2539
                  %v2541 = vld [vmem:[%s2537 + $0x4] sm:$0xf]
                  %2542 = vst [vmem:[%s2538 + $0x4] sm:$0xf] %v2541
                  %v2543 = vld [vmem:[%s2537 + $0x8] sm:$0xf]
                  %2544 = vst [vmem:[%s2538 + $0x8] sm:$0xf] %v2543
                  %v2545 = vld [vmem:[%s2537 + $0xc] sm:$0xf]
                  %2546 = vst [vmem:[%s2538 + $0xc] sm:$0xf] %v2545
                  %v2547 = vld [vmem:[%s2537 + $0x10] sm:$0xf]
                  %2548 = vst [vmem:[%s2538 + $0x10] sm:$0xf] %v2547
                  %v2549 = vld [vmem:[%s2537 + $0x14] sm:$0xf]
                  %2550 = vst [vmem:[%s2538 + $0x14] sm:$0xf] %v2549
                  %v2551 = vld [vmem:[%s2537 + $0x18] sm:$0xf]
                  %2552 = vst [vmem:[%s2538 + $0x18] sm:$0xf] %v2551
                  %v2553 = vld [vmem:[%s2537 + $0x1c] sm:$0xf]
                  %2554 = vst [vmem:[%s2538 + $0x1c] sm:$0xf] %v2553
                  %v2555 = vld [vmem:[%s2537 + $0x20] sm:$0xf]
                  %2556 = vst [vmem:[%s2538 + $0x20] sm:$0xf] %v2555
                  %v2557 = vld [vmem:[%s2537 + $0x24] sm:$0xf]
                  %2558 = vst [vmem:[%s2538 + $0x24] sm:$0xf] %v2557
                  %v2559 = vld [vmem:[%s2537 + $0x28] sm:$0xf]
                  %2560 = vst [vmem:[%s2538 + $0x28] sm:$0xf] %v2559
                  %v2561 = vld [vmem:[%s2537 + $0x2c] sm:$0xf]
                  %2562 = vst [vmem:[%s2538 + $0x2c] sm:$0xf] %v2561
                  %v2563 = vld [vmem:[%s2537 + $0x30] sm:$0xf]
                  %2564 = vst [vmem:[%s2538 + $0x30] sm:$0xf] %v2563
                  %v2565 = vld [vmem:[%s2537 + $0x34] sm:$0xf]
                  %2566 = vst [vmem:[%s2538 + $0x34] sm:$0xf] %v2565
                  %v2567 = vld [vmem:[%s2537 + $0x38] sm:$0xf]
                  %2568 = vst [vmem:[%s2538 + $0x38] sm:$0xf] %v2567
                  %v2569 = vld [vmem:[%s2537 + $0x3c] sm:$0xf]
                  %2570 = vst [vmem:[%s2538 + $0x3c] sm:$0xf] %v2569
                  %v2571 = vld [vmem:[%s2537 + $0x40] sm:$0xf]
                  %2572 = vst [vmem:[%s2538 + $0x40] sm:$0xf] %v2571
                  %v2573 = vld [vmem:[%s2537 + $0x44] sm:$0xf]
                  %2574 = vst [vmem:[%s2538 + $0x44] sm:$0xf] %v2573
                  %v2575 = vld [vmem:[%s2537 + $0x48] sm:$0xf]
                  %2576 = vst [vmem:[%s2538 + $0x48] sm:$0xf] %v2575
                  %v2577 = vld [vmem:[%s2537 + $0x4c] sm:$0xf]
                  %2578 = vst [vmem:[%s2538 + $0x4c] sm:$0xf] %v2577
                  %v2579 = vld [vmem:[%s2537 + $0x50] sm:$0xf]
                  %2580 = vst [vmem:[%s2538 + $0x50] sm:$0xf] %v2579
                  %v2581 = vld [vmem:[%s2537 + $0x54] sm:$0xf]
                  %2582 = vst [vmem:[%s2538 + $0x54] sm:$0xf] %v2581
                  %v2583 = vld [vmem:[%s2537 + $0x58] sm:$0xf]
                  %2584 = vst [vmem:[%s2538 + $0x58] sm:$0xf] %v2583
                  %v2585 = vld [vmem:[%s2537 + $0x5c] sm:$0xf]
                  %2586 = vst [vmem:[%s2538 + $0x5c] sm:$0xf] %v2585
                  %v2587 = vld [vmem:[%s2537 + $0x60] sm:$0xf]
                  %2588 = vst [vmem:[%s2538 + $0x60] sm:$0xf] %v2587
                  %v2589 = vld [vmem:[%s2537 + $0x64] sm:$0xf]
                  %2590 = vst [vmem:[%s2538 + $0x64] sm:$0xf] %v2589
                  %v2591 = vld [vmem:[%s2537 + $0x68] sm:$0xf]
                  %2592 = vst [vmem:[%s2538 + $0x68] sm:$0xf] %v2591
                  %v2593 = vld [vmem:[%s2537 + $0x6c] sm:$0xf]
                  %2594 = vst [vmem:[%s2538 + $0x6c] sm:$0xf] %v2593
                  %v2595 = vld [vmem:[%s2537 + $0x70] sm:$0xf]
                  %2596 = vst [vmem:[%s2538 + $0x70] sm:$0xf] %v2595
                  %v2597 = vld [vmem:[%s2537 + $0x74] sm:$0xf]
                  %2598 = vst [vmem:[%s2538 + $0x74] sm:$0xf] %v2597
                  %v2599 = vld [vmem:[%s2537 + $0x78] sm:$0xf]
                  %2600 = vst [vmem:[%s2538 + $0x78] sm:$0xf] %v2599
                  %v2601 = vld [vmem:[%s2537 + $0x7c] sm:$0xf]
                  %2602 = vst [vmem:[%s2538 + $0x7c] sm:$0xf] %v2601
                  %s2603 = sadd.s32 1, %s2536
                  %p2604 = scmp.ge.s32.totalorder %s2603, %s2529
                  %s2605 = scalar_select %p2604, 0, %s2603
                  %s2606 = smul.u32 %s2605, 128
                  %s2607 = smul.u32 %s2605, 128
                  %s2608 = scalar_lea.vmem %s2400, %s2606 [#allocation2]
                  %s2609 = scalar_lea.vmem %s2411, %s2607
                $region95: #{intent_classifier_forward.1} parent=89 // loop_footer
                  %s2533 = sadd.s32 %s2531, 1
                $region96: #{intent_classifier_forward.1} parent=89 // loop_footer_branch
                  %2530 = sbr.rel target = $region92
                $region97: #{intent_classifier_forward.1} parent=89 // loop_exit
                  _
                %s2610 = sshrl.u32 %s2407, 5
                %s2611 = sand.u32 %s2407, 31
                %s2612 = smul.u32 %s2610, 32
                %s2613 = smul.u32 4, %s2612
                %s2614 = scalar_lea.vmem %s2400, %s2613 [#allocation2]
                %s2615 = smul.u32 4, %s2612
                %s2616 = scalar_lea.vmem %s2411, %s2615
                // While loop
                $region98: #{intent_classifier_forward.1} parent=89 // loop_pre_header
                  _
                $region99: #{intent_classifier_forward.1} parent=89 // loop_header
                  %s2618 = sphi 0, %s2620
                  %p2619 = scmp.ge.s32.totalorder %s2618, %s2611
                  %s2623 = sphi 0, %s2630
                  %s2624 = sphi %s2614, %s2633
                  %s2625 = sphi %s2616, %s2634
                $region100: #{intent_classifier_forward.1} parent=89 // loop_header_branch
                  %2622 = sbr.rel (%p2619) target = $region104
                $region101: #{intent_classifier_forward.1} parent=89 // loop_body
                  %v2626 = vld [vmem:[%s2624] sm:$0xf]
                  %2627 = vst [vmem:[%s2625] sm:$0xf] %v2626
                  %s2628 = sadd.s32 1, %s2623
                  %p2629 = scmp.ge.s32.totalorder %s2628, %s2611
                  %s2630 = scalar_select %p2629, 0, %s2628
                  %s2631 = smul.u32 %s2630, 4
                  %s2632 = smul.u32 %s2630, 4
                  %s2633 = scalar_lea.vmem %s2614, %s2631 [#allocation2]
                  %s2634 = scalar_lea.vmem %s2616, %s2632
                $region102: #{intent_classifier_forward.1} parent=89 // loop_footer
                  %s2620 = sadd.s32 %s2618, 1
                $region103: #{intent_classifier_forward.1} parent=89 // loop_footer_branch
                  %2617 = sbr.rel target = $region99
                $region104: #{intent_classifier_forward.1} parent=89 // loop_exit
                  _
              $region90: #{intent_classifier_forward.1} parent=67 // pred_fallthru
                _
            $region68: #{intent_classifier_forward.1} parent=63 // pred_fallthru
              _
            // Predicated region
            $region69: #{intent_classifier_forward.1} parent=63 // pred_check
              _
            $region70: #{intent_classifier_forward.1} parent=63 // pred_check_branch
              %2418 = sbr.rel (0) target = $region72
            $region71: #{intent_classifier_forward.1} parent=63 // pred_region
              %s2420 = sshrl.u32 %s2407, 5
              // While loop
              $region73: #{intent_classifier_forward.1} parent=71 // loop_pre_header
                _
              $region74: #{intent_classifier_forward.1} parent=71 // loop_header
                %s2422 = sphi 0, %s2424
                %p2423 = scmp.ge.s32.totalorder %s2422, %s2420
                %s2427 = sphi 0, %s2496
                %s2428 = sphi %s2400, %s2499
                %s2429 = sphi %s2411, %s2500
              $region75: #{intent_classifier_forward.1} parent=71 // loop_header_branch
                %2426 = sbr.rel (%p2423) target = $region79
              $region76: #{intent_classifier_forward.1} parent=71 // loop_body
                %v2430 = vld [vmem:[%s2428] sm:$0xf]
                %2431 = vst [vmem:[%s2429] sm:$0xf] %v2430
                %v2432 = vld [vmem:[%s2428 + $0x4] sm:$0xf]
                %2433 = vst [vmem:[%s2429 + $0x4] sm:$0xf] %v2432
                %v2434 = vld [vmem:[%s2428 + $0x8] sm:$0xf]
                %2435 = vst [vmem:[%s2429 + $0x8] sm:$0xf] %v2434
                %v2436 = vld [vmem:[%s2428 + $0xc] sm:$0xf]
                %2437 = vst [vmem:[%s2429 + $0xc] sm:$0xf] %v2436
                %v2438 = vld [vmem:[%s2428 + $0x10] sm:$0xf]
                %2439 = vst [vmem:[%s2429 + $0x10] sm:$0xf] %v2438
                %v2440 = vld [vmem:[%s2428 + $0x14] sm:$0xf]
                %2441 = vst [vmem:[%s2429 + $0x14] sm:$0xf] %v2440
                %v2442 = vld [vmem:[%s2428 + $0x18] sm:$0xf]
                %2443 = vst [vmem:[%s2429 + $0x18] sm:$0xf] %v2442
                %v2444 = vld [vmem:[%s2428 + $0x1c] sm:$0xf]
                %2445 = vst [vmem:[%s2429 + $0x1c] sm:$0xf] %v2444
                %v2446 = vld [vmem:[%s2428 + $0x20] sm:$0xf]
                %2447 = vst [vmem:[%s2429 + $0x20] sm:$0xf] %v2446
                %v2448 = vld [vmem:[%s2428 + $0x24] sm:$0xf]
                %2449 = vst [vmem:[%s2429 + $0x24] sm:$0xf] %v2448
                %v2450 = vld [vmem:[%s2428 + $0x28] sm:$0xf]
                %2451 = vst [vmem:[%s2429 + $0x28] sm:$0xf] %v2450
                %v2452 = vld [vmem:[%s2428 + $0x2c] sm:$0xf]
                %2453 = vst [vmem:[%s2429 + $0x2c] sm:$0xf] %v2452
                %v2454 = vld [vmem:[%s2428 + $0x30] sm:$0xf]
                %2455 = vst [vmem:[%s2429 + $0x30] sm:$0xf] %v2454
                %v2456 = vld [vmem:[%s2428 + $0x34] sm:$0xf]
                %2457 = vst [vmem:[%s2429 + $0x34] sm:$0xf] %v2456
                %v2458 = vld [vmem:[%s2428 + $0x38] sm:$0xf]
                %2459 = vst [vmem:[%s2429 + $0x38] sm:$0xf] %v2458
                %v2460 = vld [vmem:[%s2428 + $0x3c] sm:$0xf]
                %2461 = vst [vmem:[%s2429 + $0x3c] sm:$0xf] %v2460
                %v2462 = vld [vmem:[%s2428 + $0x40] sm:$0xf]
                %2463 = vst [vmem:[%s2429 + $0x40] sm:$0xf] %v2462
                %v2464 = vld [vmem:[%s2428 + $0x44] sm:$0xf]
                %2465 = vst [vmem:[%s2429 + $0x44] sm:$0xf] %v2464
                %v2466 = vld [vmem:[%s2428 + $0x48] sm:$0xf]
                %2467 = vst [vmem:[%s2429 + $0x48] sm:$0xf] %v2466
                %v2468 = vld [vmem:[%s2428 + $0x4c] sm:$0xf]
                %2469 = vst [vmem:[%s2429 + $0x4c] sm:$0xf] %v2468
                %v2470 = vld [vmem:[%s2428 + $0x50] sm:$0xf]
                %2471 = vst [vmem:[%s2429 + $0x50] sm:$0xf] %v2470
                %v2472 = vld [vmem:[%s2428 + $0x54] sm:$0xf]
                %2473 = vst [vmem:[%s2429 + $0x54] sm:$0xf] %v2472
                %v2474 = vld [vmem:[%s2428 + $0x58] sm:$0xf]
                %2475 = vst [vmem:[%s2429 + $0x58] sm:$0xf] %v2474
                %v2476 = vld [vmem:[%s2428 + $0x5c] sm:$0xf]
                %2477 = vst [vmem:[%s2429 + $0x5c] sm:$0xf] %v2476
                %v2478 = vld [vmem:[%s2428 + $0x60] sm:$0xf]
                %2479 = vst [vmem:[%s2429 + $0x60] sm:$0xf] %v2478
                %v2480 = vld [vmem:[%s2428 + $0x64] sm:$0xf]
                %2481 = vst [vmem:[%s2429 + $0x64] sm:$0xf] %v2480
                %v2482 = vld [vmem:[%s2428 + $0x68] sm:$0xf]
                %2483 = vst [vmem:[%s2429 + $0x68] sm:$0xf] %v2482
                %v2484 = vld [vmem:[%s2428 + $0x6c] sm:$0xf]
                %2485 = vst [vmem:[%s2429 + $0x6c] sm:$0xf] %v2484
                %v2486 = vld [vmem:[%s2428 + $0x70] sm:$0xf]
                %2487 = vst [vmem:[%s2429 + $0x70] sm:$0xf] %v2486
                %v2488 = vld [vmem:[%s2428 + $0x74] sm:$0xf]
                %2489 = vst [vmem:[%s2429 + $0x74] sm:$0xf] %v2488
                %v2490 = vld [vmem:[%s2428 + $0x78] sm:$0xf]
                %2491 = vst [vmem:[%s2429 + $0x78] sm:$0xf] %v2490
                %v2492 = vld [vmem:[%s2428 + $0x7c] sm:$0xf]
                %2493 = vst [vmem:[%s2429 + $0x7c] sm:$0xf] %v2492
                %s2494 = sadd.s32 1, %s2427
                %p2495 = scmp.ge.s32.totalorder %s2494, %s2420
                %s2496 = scalar_select %p2495, 0, %s2494
                %s2497 = smul.u32 %s2496, 128
                %s2498 = smul.u32 %s2496, 128
                %s2499 = scalar_lea.vmem %s2400, %s2497 [#allocation2]
                %s2500 = scalar_lea.vmem %s2411, %s2498
              $region77: #{intent_classifier_forward.1} parent=71 // loop_footer
                %s2424 = sadd.s32 %s2422, 1
              $region78: #{intent_classifier_forward.1} parent=71 // loop_footer_branch
                %2421 = sbr.rel target = $region74
              $region79: #{intent_classifier_forward.1} parent=71 // loop_exit
                _
              %s2501 = sshrl.u32 %s2407, 5
              %s2502 = sand.u32 %s2407, 31
              %s2503 = smul.u32 %s2501, 32
              %s2504 = smul.u32 4, %s2503
              %s2505 = scalar_lea.vmem %s2400, %s2504 [#allocation2]
              %s2506 = smul.u32 4, %s2503
              %s2507 = scalar_lea.vmem %s2411, %s2506
              // While loop
              $region80: #{intent_classifier_forward.1} parent=71 // loop_pre_header
                _
              $region81: #{intent_classifier_forward.1} parent=71 // loop_header
                %s2509 = sphi 0, %s2511
                %p2510 = scmp.ge.s32.totalorder %s2509, %s2502
                %s2514 = sphi 0, %s2521
                %s2515 = sphi %s2505, %s2524
                %s2516 = sphi %s2507, %s2525
              $region82: #{intent_classifier_forward.1} parent=71 // loop_header_branch
                %2513 = sbr.rel (%p2510) target = $region86
              $region83: #{intent_classifier_forward.1} parent=71 // loop_body
                %v2517 = vld [vmem:[%s2515] sm:$0xf]
                %2518 = vst [vmem:[%s2516] sm:$0xf] %v2517
                %s2519 = sadd.s32 1, %s2514
                %p2520 = scmp.ge.s32.totalorder %s2519, %s2502
                %s2521 = scalar_select %p2520, 0, %s2519
                %s2522 = smul.u32 %s2521, 4
                %s2523 = smul.u32 %s2521, 4
                %s2524 = scalar_lea.vmem %s2505, %s2522 [#allocation2]
                %s2525 = scalar_lea.vmem %s2507, %s2523
              $region84: #{intent_classifier_forward.1} parent=71 // loop_footer
                %s2511 = sadd.s32 %s2509, 1
              $region85: #{intent_classifier_forward.1} parent=71 // loop_footer_branch
                %2508 = sbr.rel target = $region81
              $region86: #{intent_classifier_forward.1} parent=71 // loop_exit
                _
            $region72: #{intent_classifier_forward.1} parent=63 // pred_fallthru
              _
          $region64: #{intent_classifier_forward.1} parent=59 // pred_fallthru
            _
          %2635 = vnop
        $region60: #{intent_classifier_forward.1} parent=55 // pred_fallthru
          _
      $region56: #{intent_classifier_forward.1} parent=5 // pred_fallthru
        _
      %p2636 = scmp.le.s32.totalorder 2, %s15
      // Predicated region
      $region105: #{intent_classifier_forward.1} parent=5 // pred_check
        %p2637 = pneg %p2636
      $region106: #{intent_classifier_forward.1} parent=5 // pred_check_branch
        %2639 = sbr.rel (%p2637) target = $region108
      $region107: #{intent_classifier_forward.1} parent=5 // pred_region
        %s2640 = ssub.s32 %s15, 2
        // Predicated region
        $region109: #{intent_classifier_forward.1} parent=107 // pred_check
          %p2641 = pneg %p238
        $region110: #{intent_classifier_forward.1} parent=107 // pred_check_branch
          %2643 = sbr.rel (%p2641) target = $region112
        $region111: #{intent_classifier_forward.1} parent=107 // pred_region
          %s2644 = sand.u32 %s223, 1
          %s2645 = sand.u32 %s223, 1
          %s2646 = smul.addr %s2645, 128
          %s2647 = scalar_lea.vmem [#allocation2], %s2646
        $region112: #{intent_classifier_forward.1} parent=107 // pred_fallthru
          _
      $region108: #{intent_classifier_forward.1} parent=5 // pred_fallthru
        _
    $region6: #{intent_classifier_forward.1} parent=1 // loop_footer
      %s19 = sadd.s32 1, %s15
    $region7: #{intent_classifier_forward.1} parent=1 // loop_footer_branch
      %14 = sbr.rel target = $region3
    $region8: #{intent_classifier_forward.1} parent=1 // loop_exit
      _

</llo_original>
